<compile_context>
chip_gen: v7x
topology: tpu7x:2x2x1
jax: 0.10.0
libtpu: 0.0.40
codegen_flags: <defaults>
</compile_context>

<pallas_src>
import functools

import jax
import jax.numpy as jnp
from jax.experimental import pallas as pl
from jax.experimental.pallas import tpu as pltpu


def det_pred_kernel(x_ref, anch_ref, kmask_ref, w_ref, b_ref, out_ref,
                    *, stride, nreg):
    # x:    (TR, 2C)   packed [cls_feat | reg_feat] channels (bf16)
    # w:    (2C, 128)  fused [w_reg | w_reg_swapped | w_obj | w_cls | 0] (bf16)
    # b:    (1, 128)   fused bias (f32)
    # anch: (TR, 2*nreg) = [anch_self | anch_swap]  (f32)
    # kmask:(1, nreg)  1.0 where channel k%4 < 2
    # out:  (TR, 128)  [reg | box | obj | cls | pad]

    # Single fused MXU matmul (f32 accumulation) + one broadcast bias add.
    y = jnp.dot(x_ref[...], w_ref[...],
                preferred_element_type=jnp.float32) + b_ref[...]

    anch = anch_ref[...]
    reg = y[:, :nreg]                    # raw reg logits, channel = a*4 + k
    regsw = y[:, nreg:2 * nreg]          # same logits with (tx,ty)<->(tw,th) swapped
    a_self = anch[:, :nreg]              # [gx,gy,aw,ah] at channel a*4+k
    a_swap = anch[:, nreg:]              # swapped anchors

    # k < 2 lanes (x1/y1): center(self) - 0.5 * size(swap)
    xy1 = (jax.nn.sigmoid(reg) * 2.0 - 0.5 + a_self) * stride \
        - 0.5 * jnp.exp(regsw) * a_swap
    # k >= 2 lanes (x2/y2): center(swap) + 0.5 * size(self)
    xy2 = (jax.nn.sigmoid(regsw) * 2.0 - 0.5 + a_swap) * stride \
        + 0.5 * jnp.exp(reg) * a_self
    # Note: the discarded branch may transiently hold exp() of tx/ty logits;
    # jnp.where is a select so it never propagates to the output.
    box = jnp.where(kmask_ref[...] > 0.5, xy1, xy2)

    # Assemble the lane-dense output slab: box overwrites the reg_swap columns.
    out_ref[...] = jnp.concatenate([reg, box, y[:, 2 * nreg:]], axis=1)


def generate_anchors(H, W, anchor_sizes):
    # Matches DetPredLayer.generate_anchors (meshgrid 'ij', p = y*W + x).
    gy, gx = jnp.meshgrid(jnp.arange(H, dtype=jnp.float32),
                          jnp.arange(W, dtype=jnp.float32), indexing='ij')
    xy = jnp.stack([gx, gy], axis=-1).reshape(-1, 2)                 # (HW, 2)
    A = anchor_sizes.shape[0]
    xy = jnp.repeat(xy[:, None, :], A, axis=1).reshape(-1, 2)        # (HW*A, 2)
    wh = jnp.tile(anchor_sizes[None, :, :], (H * W, 1, 1)).reshape(-1, 2)
    return jnp.concatenate([xy, wh], axis=-1)                        # (HW*A, 4)


def init_params(key, cls_dim, reg_dim, num_classes, num_anchors):
    k1, k2 = jax.random.split(key)
    init_prob = 0.01
    bias_value = -jnp.log(jnp.asarray((1.0 - init_prob) / init_prob, jnp.float32))
    A = num_anchors
    return dict(
        w_obj=jax.random.normal(k1, (cls_dim, A), jnp.float32) * 0.02,
        b_obj=jnp.full((1, A), bias_value, jnp.float32),
        w_cls=jax.random.normal(k2, (cls_dim, num_classes * A), jnp.float32) * 0.02,
        b_cls=jnp.full((1, num_classes * A), bias_value, jnp.float32),
        w_reg=jnp.zeros((reg_dim, 4 * A), jnp.float32),   # init_bias zeroes reg weight
        b_reg=jnp.full((1, 4 * A), 1.0, jnp.float32),     # init_bias sets reg bias = 1
    )


def prepare_det_pred(params, anchor_sizes, H, W, num_classes,
                     mxu_dtype=jnp.bfloat16, n_pad=128):
    """Pack fused weights/bias, decode-layout anchors and the k-mask once."""
    A = int(anchor_sizes.shape[0])
    NC = int(num_classes)
    C = params['w_cls'].shape[0]
    nreg = 4 * A
    used = 2 * nreg + A + A * NC
    assert used <= n_pad, "fused head width must fit the 128-lane pad"

    j = jnp.arange(nreg)
    sw = (j // 4) * 4 + (j % 4 + 2) % 4        # (tx,ty,tw,th) -> (tw,th,tx,ty)

    REG = slice(0, nreg)
    RSW = slice(nreg, 2 * nreg)
    OBJ = slice(2 * nreg, 2 * nreg + A)
    CLS = slice(2 * nreg + A, used)

    wf = jnp.zeros((2 * C, n_pad), jnp.float32)
    bf = jnp.zeros((1, n_pad), jnp.float32)
    # rows [0:C) = cls_feat channels, rows [C:2C) = reg_feat channels
    wf = wf.at[C:, REG].set(params['w_reg'])
    wf = wf.at[C:, RSW].set(params['w_reg'][:, sw])
    wf = wf.at[C:, OBJ].set(params['w_obj'])
    wf = wf.at[:C, CLS].set(params['w_cls'])
    bf = bf.at[:, REG].set(params['b_reg'])
    bf = bf.at[:, RSW].set(params['b_reg'][:, sw])
    bf = bf.at[:, OBJ].set(params['b_obj'])
    bf = bf.at[:, CLS].set(params['b_cls'])

    anchors = generate_anchors(H, W, anchor_sizes)            # (HW*A, 4)
    anch_dec = anchors.reshape(H * W, nreg)                   # col = a*4 + k
    anch_both = jnp.concatenate([anch_dec, anch_dec[:, sw]], axis=1)  # (HW, 2*nreg)

    kmask = ((j % 4) < 2).astype(jnp.float32).reshape(1, nreg)

    return dict(wf=wf.astype(mxu_dtype), bf=bf, anch_both=anch_both,
                kmask=kmask, anchors=anchors, mxu_dtype=mxu_dtype,
                A=A, NC=NC, C=C, nreg=nreg, n_pad=n_pad,
                col_reg=(0, nreg), col_box=(nreg, 2 * nreg),
                col_obj=(2 * nreg, 2 * nreg + A), col_cls=(2 * nreg + A, used))


def _pick_row_tile(rows):
    # Largest tile <= 2048 rows that divides `rows` and leaves >= 2 grid steps
    # (keeps both v7x TensorCores busy; bounds double-buffered VMEM on 64 MiB
    # parts).  Falls back to a single whole-rows step for tiny inputs.
    for tile in (2048, 1024, 512, 256, 128, 64, 32, 16, 8):
        if rows % tile == 0 and rows // tile >= 2:
            return tile
    return rows


def det_pred_forward(cls_feat, reg_feat, prepared, stride):
    """cls_feat, reg_feat: NCHW float32 (PyTorch convention)."""
    B, C, H, W = cls_feat.shape
    assert reg_feat.shape == cls_feat.shape and C == prepared['C']
    HW = H * W
    rows = B * HW
    A, NC = prepared['A'], prepared['NC']
    nreg, n_pad = prepared['nreg'], prepared['n_pad']

    # Glue: NCHW -> (rows, 2C) with channels packed as [cls_feat | reg_feat].
    x_cls = jnp.transpose(cls_feat, (0, 2, 3, 1)).reshape(rows, C)
    x_reg = jnp.transpose(reg_feat, (0, 2, 3, 1)).reshape(rows, C)
    x = jnp.concatenate([x_cls, x_reg], axis=1).astype(prepared['mxu_dtype'])

    anch = jnp.tile(prepared['anch_both'], (B, 1))            # (rows, 2*nreg)

    tr = _pick_row_tile(rows)
    grid = (rows // tr,)

    out = pl.pallas_call(
        functools.partial(det_pred_kernel, stride=float(stride), nreg=nreg),
        out_shape=jax.ShapeDtypeStruct((rows, n_pad), jnp.float32),
        grid=grid,
        in_specs=[
            pl.BlockSpec((tr, 2 * C), lambda i: (i, 0)),       # features
            pl.BlockSpec((tr, 2 * nreg), lambda i: (i, 0)),    # anchors (self|swap)
            pl.BlockSpec((1, nreg), lambda i: (0, 0)),         # k<2 mask (invariant)
            pl.BlockSpec((2 * C, n_pad), lambda i: (0, 0)),    # fused weight (invariant)
            pl.BlockSpec((1, n_pad), lambda i: (0, 0)),        # fused bias (invariant)
        ],
        out_specs=pl.BlockSpec((tr, n_pad), lambda i: (i, 0)), # lane-dense slab
        compiler_params=pltpu.CompilerParams(
            dimension_semantics=("parallel",),
            vmem_limit_bytes=32 * 1024 * 1024),
    )(x, anch, prepared['kmask'], prepared['wf'], prepared['bf'])

    out = out.reshape(B, HW, n_pad)
    r0, r1 = prepared['col_reg']
    b0, b1 = prepared['col_box']
    o0, o1 = prepared['col_obj']
    c0, c1 = prepared['col_cls']
    return {
        'pred_obj': out[:, :, o0:o1].reshape(B, HW * A, 1),
        'pred_cls': out[:, :, c0:c1].reshape(B, HW * A, NC),
        'pred_reg': out[:, :, r0:r1].reshape(B, HW * A, 4),
        'pred_box': out[:, :, b0:b1].reshape(B, HW * A, 4),
        'anchors': prepared['anchors'],
        'fmp_size': [H, W],
        'stride': stride,
    }


def ref_forward(cls_feat, reg_feat, params, anchors, stride, num_classes, A):
    # Pure-JAX f32 reference mirroring the PyTorch forward.
    B, C, H, W = cls_feat.shape
    HW = H * W

    def conv1x1(x, w, b):
        return jnp.einsum('bchw,co->bhwo', x, w) + b.reshape(-1)

    obj = conv1x1(reg_feat, params['w_obj'], params['b_obj']).reshape(B, HW * A, 1)
    cls = conv1x1(cls_feat, params['w_cls'], params['b_cls']).reshape(B, HW * A, num_classes)
    reg = conv1x1(reg_feat, params['w_reg'], params['b_reg']).reshape(B, HW * A, 4)
    cxcy = (jax.nn.sigmoid(reg[..., :2]) * 2.0 - 0.5 + anchors[..., :2]) * stride
    bwbh = jnp.exp(reg[..., 2:]) * anchors[..., 2:]
    box = jnp.concatenate([cxcy - 0.5 * bwbh, cxcy + 0.5 * bwbh], axis=-1)
    return obj, cls, reg, box


if __name__ == "__main__":
    B, C, H, W = 2, 32, 16, 16        # cls_dim == reg_dim == 32 (required by the module)
    num_classes = 8
    stride = 8
    anchor_sizes = jnp.asarray([[10.0, 13.0], [16.0, 30.0], [33.0, 23.0]], jnp.float32)
    A = anchor_sizes.shape[0]

    key = jax.random.PRNGKey(0)
    k_cls, k_reg, k_params = jax.random.split(key, 3)
    cls_feat = jax.random.normal(k_cls, (B, C, H, W), jnp.float32)
    reg_feat = jax.random.normal(k_reg, (B, C, H, W), jnp.float32)
    params = init_params(k_params, C, C, num_classes, A)

    # Pack fused weights / anchors / masks once (outside the per-step forward).
    prepared = prepare_det_pred(params, anchor_sizes, H, W, num_classes)

    out = det_pred_forward(cls_feat, reg_feat, prepared, stride)
    jax.block_until_ready(out['pred_box'])

    # Correctness check against a pure-JAX f32 reference.
    r_obj, r_cls, r_reg, r_box = ref_forward(
        cls_feat, reg_feat, params, out['anchors'], stride, num_classes, A)
    # obj / cls go through a bf16 MXU matmul (f32 accumulate) -> loose tolerance;
    # reg / box are exact at this init (zero reg weights) -> tight tolerance.
    assert jnp.allclose(out['pred_obj'], r_obj, atol=5e-2, rtol=2e-2)
    assert jnp.allclose(out['pred_cls'], r_cls, atol=5e-2, rtol=2e-2)
    assert jnp.allclose(out['pred_reg'], r_reg, atol=1e-3, rtol=1e-4)
    assert jnp.allclose(out['pred_box'], r_box, atol=1e-2, rtol=1e-4)

    print("KERNEL_OK")
</pallas_src>

<mosaic_0001>
module attributes {stable_mosaic.version = 11 : i64} {
  func.func @det_pred_kernel(%arg0: i32, %arg1: memref<256x64xbf16, #tpu.memory_space<vmem>>, %arg2: memref<256x24xf32, #tpu.memory_space<vmem>>, %arg3: memref<1x12xf32, #tpu.memory_space<vmem>>, %arg4: memref<64x128xbf16, #tpu.memory_space<vmem>>, %arg5: memref<1x128xf32, #tpu.memory_space<vmem>>, %arg6: memref<256x128xf32, #tpu.memory_space<vmem>>) attributes {dimension_semantics = [#tpu.dimension_semantics<parallel>], iteration_bounds = array<i64: 2>, scalar_prefetch = 0 : i64, scratch_operands = 0 : i64, tpu.core_type = #tpu.core_type<tc>, window_params = [{transform_indices = @transform_0, window_bounds = array<i64: 256, 64>}, {transform_indices = @transform_1, window_bounds = array<i64: 256, 24>}, {pipeline_mode = #tpu.pipeline_mode<synchronous>, transform_indices = @transform_2, window_bounds = array<i64: 1, 12>}, {pipeline_mode = #tpu.pipeline_mode<synchronous>, transform_indices = @transform_3, window_bounds = array<i64: 64, 128>}, {pipeline_mode = #tpu.pipeline_mode<synchronous>, transform_indices = @transform_4, window_bounds = array<i64: 1, 128>}, {transform_indices = @transform_5, window_bounds = array<i64: 256, 128>}]} {
    %c0 = arith.constant 0 : index
    %c0_0 = arith.constant 0 : index
    %0 = vector.load %arg1[%c0, %c0_0] : memref<256x64xbf16, #tpu.memory_space<vmem>>, vector<256x64xbf16>
    %c0_1 = arith.constant 0 : index
    %c0_2 = arith.constant 0 : index
    %1 = vector.load %arg4[%c0_1, %c0_2] : memref<64x128xbf16, #tpu.memory_space<vmem>>, vector<64x128xbf16>
    %cst = arith.constant dense<0.000000e+00> : vector<256x128xf32>
    %2 = tpu.matmul %0, %1, %cst {dimension_numbers = #tpu.dot_dimension_numbers<[1], [0], [0], [1], [0, 0, 1, 1], [], []>} : vector<256x64xbf16>, vector<64x128xbf16>, vector<256x128xf32> -> vector<256x128xf32>
    %c0_3 = arith.constant 0 : index
    %c0_4 = arith.constant 0 : index
    %3 = vector.load %arg5[%c0_3, %c0_4] : memref<1x128xf32, #tpu.memory_space<vmem>>, vector<1x128xf32>
    %4 = vector.broadcast %3 : vector<1x128xf32> to vector<256x128xf32>
    %5 = arith.addf %2, %4 : vector<256x128xf32>
    %c0_5 = arith.constant 0 : index
    %c0_6 = arith.constant 0 : index
    %6 = vector.load %arg2[%c0_5, %c0_6] : memref<256x24xf32, #tpu.memory_space<vmem>>, vector<256x24xf32>
    %7 = vector.extract_strided_slice %5 {offsets = [0, 0], sizes = [256, 12], strides = [1, 1]} : vector<256x128xf32> to vector<256x12xf32>
    %8 = vector.extract_strided_slice %5 {offsets = [0, 12], sizes = [256, 12], strides = [1, 1]} : vector<256x128xf32> to vector<256x12xf32>
    %9 = vector.extract_strided_slice %6 {offsets = [0, 0], sizes = [256, 12], strides = [1, 1]} : vector<256x24xf32> to vector<256x12xf32>
    %10 = vector.extract_strided_slice %6 {offsets = [0, 12], sizes = [256, 12], strides = [1, 1]} : vector<256x24xf32> to vector<256x12xf32>
    %11 = arith.negf %7 : vector<256x12xf32>
    %12 = math.exp %11 : vector<256x12xf32>
    %cst_7 = arith.constant 1.000000e+00 : f32
    %13 = vector.broadcast %cst_7 : f32 to vector<256x12xf32>
    %14 = arith.addf %13, %12 : vector<256x12xf32>
    %15 = arith.divf %13, %14 : vector<256x12xf32>
    %cst_8 = arith.constant 2.000000e+00 : f32
    %16 = vector.broadcast %cst_8 : f32 to vector<256x12xf32>
    %17 = arith.mulf %15, %16 : vector<256x12xf32>
    %cst_9 = arith.constant 5.000000e-01 : f32
    %18 = vector.broadcast %cst_9 : f32 to vector<256x12xf32>
    %19 = arith.subf %17, %18 : vector<256x12xf32>
    %20 = arith.addf %19, %9 : vector<256x12xf32>
    %cst_10 = arith.constant 8.000000e+00 : f32
    %21 = vector.broadcast %cst_10 : f32 to vector<256x12xf32>
    %22 = arith.mulf %20, %21 : vector<256x12xf32>
    %23 = math.exp %8 : vector<256x12xf32>
    %cst_11 = arith.constant 5.000000e-01 : f32
    %24 = vector.broadcast %cst_11 : f32 to vector<256x12xf32>
    %25 = arith.mulf %24, %23 : vector<256x12xf32>
    %26 = arith.mulf %25, %10 : vector<256x12xf32>
    %27 = arith.subf %22, %26 : vector<256x12xf32>
    %28 = arith.negf %8 : vector<256x12xf32>
    %29 = math.exp %28 : vector<256x12xf32>
    %cst_12 = arith.constant 1.000000e+00 : f32
    %30 = vector.broadcast %cst_12 : f32 to vector<256x12xf32>
    %31 = arith.addf %30, %29 : vector<256x12xf32>
    %32 = arith.divf %30, %31 : vector<256x12xf32>
    %cst_13 = arith.constant 2.000000e+00 : f32
    %33 = vector.broadcast %cst_13 : f32 to vector<256x12xf32>
    %34 = arith.mulf %32, %33 : vector<256x12xf32>
    %cst_14 = arith.constant 5.000000e-01 : f32
    %35 = vector.broadcast %cst_14 : f32 to vector<256x12xf32>
    %36 = arith.subf %34, %35 : vector<256x12xf32>
    %37 = arith.addf %36, %10 : vector<256x12xf32>
    %cst_15 = arith.constant 8.000000e+00 : f32
    %38 = vector.broadcast %cst_15 : f32 to vector<256x12xf32>
    %39 = arith.mulf %37, %38 : vector<256x12xf32>
    %40 = math.exp %7 : vector<256x12xf32>
    %cst_16 = arith.constant 5.000000e-01 : f32
    %41 = vector.broadcast %cst_16 : f32 to vector<256x12xf32>
    %42 = arith.mulf %41, %40 : vector<256x12xf32>
    %43 = arith.mulf %42, %9 : vector<256x12xf32>
    %44 = arith.addf %39, %43 : vector<256x12xf32>
    %c0_17 = arith.constant 0 : index
    %c0_18 = arith.constant 0 : index
    %45 = vector.load %arg3[%c0_17, %c0_18] : memref<1x12xf32, #tpu.memory_space<vmem>>, vector<1x12xf32>
    %cst_19 = arith.constant 5.000000e-01 : f32
    %46 = vector.broadcast %cst_19 : f32 to vector<1x12xf32>
    %47 = arith.cmpf ogt, %45, %46 : vector<1x12xf32>
    %48 = vector.shape_cast %47 : vector<1x12xi1> to vector<1x12xi1>
    %49 = vector.broadcast %48 : vector<1x12xi1> to vector<256x12xi1>
    %50 = arith.select %49, %27, %44 : vector<256x12xi1>, vector<256x12xf32>
    %51 = vector.extract_strided_slice %5 {offsets = [0, 24], sizes = [256, 104], strides = [1, 1]} : vector<256x128xf32> to vector<256x104xf32>
    %52 = tpu.concatenate %7, %50, %51 in 1 : vector<256x12xf32>, vector<256x12xf32>, vector<256x104xf32> -> vector<256x128xf32>
    %c0_20 = arith.constant 0 : index
    %c0_21 = arith.constant 0 : index
    %53 = vector.load %arg6[%c0_20, %c0_21] : memref<256x128xf32, #tpu.memory_space<vmem>>, vector<256x128xf32>
    tpu.vector_store %arg6[%c0_20, %c0_21], %52 {strides = array<i32>} : memref<256x128xf32, #tpu.memory_space<vmem>>, vector<256x128xf32>,
    return
  }
  func.func @transform_0(%arg0: i32) -> (i32, i32) {
    %c0_i32 = arith.constant 0 : i32
    %c0_i32_0 = arith.constant 0 : i32
    return %arg0, %c0_i32 : i32, i32
  }
  func.func @transform_1(%arg0: i32) -> (i32, i32) {
    %c0_i32 = arith.constant 0 : i32
    %c0_i32_0 = arith.constant 0 : i32
    return %arg0, %c0_i32 : i32, i32
  }
  func.func @transform_2(%arg0: i32) -> (i32, i32) {
    %c0_i32 = arith.constant 0 : i32
    %c0_i32_0 = arith.constant 0 : i32
    %c0_i32_1 = arith.constant 0 : i32
    return %c0_i32, %c0_i32_0 : i32, i32
  }
  func.func @transform_3(%arg0: i32) -> (i32, i32) {
    %c0_i32 = arith.constant 0 : i32
    %c0_i32_0 = arith.constant 0 : i32
    %c0_i32_1 = arith.constant 0 : i32
    return %c0_i32, %c0_i32_0 : i32, i32
  }
  func.func @transform_4(%arg0: i32) -> (i32, i32) {
    %c0_i32 = arith.constant 0 : i32
    %c0_i32_0 = arith.constant 0 : i32
    %c0_i32_1 = arith.constant 0 : i32
    return %c0_i32, %c0_i32_0 : i32, i32
  }
  func.func @transform_5(%arg0: i32) -> (i32, i32) {
    %c0_i32 = arith.constant 0 : i32
    %c0_i32_0 = arith.constant 0 : i32
    return %arg0, %c0_i32 : i32, i32
  }
}

</mosaic_0001>

<llo_original>
// kernel: tpu_custom_call.1
$region0: #{tpu_custom_call.1}
  #allocation0 [shape = 'u32[]', space=smem, size = 0x4, offset = 0x4, fixed_abs, tag = 'smem constant byte address 0x4 - core index']
  #allocation1 [shape = 'u32[144,128]{1,0:T(1,128)}', space=vmem, size = 0x12000, scoped, tag = 'internal scratch']
  %s0 = inlined_call_operand.vmem [shape: bf16[512,64], index: 0, kind: input, shape index: {}]
  %s1 = inlined_call_operand.vmem [shape: f32[512,24], index: 1, kind: input, shape index: {}]
  %s2 = inlined_call_operand.vmem [shape: f32[1,12], index: 2, kind: input, shape index: {}]
  %s3 = inlined_call_operand.vmem [shape: bf16[64,128], index: 3, kind: input, shape index: {}]
  %s4 = inlined_call_operand.vmem [shape: f32[1,128], index: 4, kind: input, shape index: {}]
  %s5 = inlined_call_operand.hbm [shape: f32[512,128], index: 5, kind: output, shape index: {}]
  %s6 = sld [smem:[#allocation0]]
  $region53: #{tpu_custom_call.1} parent=0
    _
  %s8 = ssub.s32 1, %s6
  %s9 = scalar_select 0, %s8, %s6
  $region1: #{tpu_custom_call.1} parent=0
    #allocation2 [shape = 'u8[262144]{0}', space=vmem, size = 0x40000, scoped, tag = 'output window, operand 0']
    #allocation3 [shape = 's32[2]{0}', space=sflag, size = 0x8, scoped, tag = 'scoped memory for tpu_custom_call.1']
    %10 = vsyncpa [#allocation3], 0
    %s11 = scalar_lea.sflag [#allocation3], 1
    %12 = vsyncpa %s11, 0
    loop: start=0, step=1, limit=4
    $region2: #{tpu_custom_call.1} parent=1 // loop_pre_header
      _
    $region3: #{tpu_custom_call.1} parent=1 // loop_header
      %s14 = sphi 0, %s18
      %p15 = scmp.ge.s32.totalorder %s14, 4
      %s24 = sphi 0, %s26
      %s27 = sphi 0, %s24
      %s28 = sphi 0, %s27
      %s44 = sphi 0, %s28
      %s50 = sphi 0, %s52
      %s53 = sphi 0, %s50
      %s54 = sphi 0, %s53
      %s70 = sphi 0, %s54
      %s74 = sphi 0, %s74
      %s76 = sphi 0, %s74
      %s77 = sphi 0, %s76
      %s91 = sphi 0, %s77
      %s95 = sphi 0, %s95
      %s97 = sphi 0, %s95
      %s98 = sphi 0, %s97
      %s112 = sphi 0, %s98
      %s116 = sphi 0, %s116
      %s118 = sphi 0, %s116
      %s119 = sphi 0, %s118
      %s133 = sphi 0, %s119
      %s139 = sphi 0, %s141
      %s142 = sphi 0, %s139
      %s143 = sphi 0, %s142
      %s159 = sphi 0, %s143
    $region4: #{tpu_custom_call.1} parent=1 // loop_header_branch
      %17 = sbr.rel (%p15) target = $region8
    $region5: #{tpu_custom_call.1} parent=1 // loop_body
      %s19 = ssub.s32 %s14, 1
      %s20 = ssub.s32 %s14, 2
      %s21 = sadd.s32 %s14, 1
      %s22 = ssub.s32 %s14, %s21
      %p23 = scmp.eq.s32.totalorder %s22, 0
      %s25 = sadd.s32 %s24, 1
      %s26 = scalar_select %p23, %s24, %s25
      %p29 = pneg %p23
      %p30 = scmp.eq.s32.totalorder %s14, 1
      %p31 = por %p29, %p30
      %p32 = scmp.ne.s32.totalorder %s24, %s27
      %p33 = scmp.eq.s32.totalorder %s14, 0
      %p34 = por %p32, %p33
      %p35 = scmp.ne.s32.totalorder %s24, %s27
      %p36 = scmp.eq.s32.totalorder %s19, 1
      %p37 = por %p35, %p36
      %p38 = scmp.ne.s32.totalorder %s27, %s28
      %p39 = scmp.eq.s32.totalorder %s19, 0
      %p40 = por %p38, %p39
      %p41 = scmp.ne.s32.totalorder %s27, %s28
      %p42 = scmp.eq.s32.totalorder %s20, 1
      %p43 = por %p41, %p42
      %p45 = scmp.ne.s32.totalorder %s28, %s44
      %p46 = scmp.eq.s32.totalorder %s20, 0
      %p47 = por %p45, %p46
      %s48 = ssub.s32 %s14, %s21
      %p49 = scmp.eq.s32.totalorder %s48, 0
      %s51 = sadd.s32 %s50, 1
      %s52 = scalar_select %p49, %s50, %s51
      %p55 = pneg %p49
      %p56 = scmp.eq.s32.totalorder %s14, 1
      %p57 = por %p55, %p56
      %p58 = scmp.ne.s32.totalorder %s50, %s53
      %p59 = scmp.eq.s32.totalorder %s14, 0
      %p60 = por %p58, %p59
      %p61 = scmp.ne.s32.totalorder %s50, %s53
      %p62 = scmp.eq.s32.totalorder %s19, 1
      %p63 = por %p61, %p62
      %p64 = scmp.ne.s32.totalorder %s53, %s54
      %p65 = scmp.eq.s32.totalorder %s19, 0
      %p66 = por %p64, %p65
      %p67 = scmp.ne.s32.totalorder %s53, %s54
      %p68 = scmp.eq.s32.totalorder %s20, 1
      %p69 = por %p67, %p68
      %p71 = scmp.ne.s32.totalorder %s54, %s70
      %p72 = scmp.eq.s32.totalorder %s20, 0
      %p73 = por %p71, %p72
      %s75 = sadd.s32 %s74, 1
      %p78 = scmp.eq.s32.totalorder %s14, 1
      %p79 = scmp.ne.s32.totalorder %s74, %s76
      %p80 = scmp.eq.s32.totalorder %s14, 0
      %p81 = por %p79, %p80
      %p82 = scmp.ne.s32.totalorder %s74, %s76
      %p83 = scmp.eq.s32.totalorder %s19, 1
      %p84 = por %p82, %p83
      %p85 = scmp.ne.s32.totalorder %s76, %s77
      %p86 = scmp.eq.s32.totalorder %s19, 0
      %p87 = por %p85, %p86
      %p88 = scmp.ne.s32.totalorder %s76, %s77
      %p89 = scmp.eq.s32.totalorder %s20, 1
      %p90 = por %p88, %p89
      %p92 = scmp.ne.s32.totalorder %s77, %s91
      %p93 = scmp.eq.s32.totalorder %s20, 0
      %p94 = por %p92, %p93
      %s96 = sadd.s32 %s95, 1
      %p99 = scmp.eq.s32.totalorder %s14, 1
      %p100 = scmp.ne.s32.totalorder %s95, %s97
      %p101 = scmp.eq.s32.totalorder %s14, 0
      %p102 = por %p100, %p101
      %p103 = scmp.ne.s32.totalorder %s95, %s97
      %p104 = scmp.eq.s32.totalorder %s19, 1
      %p105 = por %p103, %p104
      %p106 = scmp.ne.s32.totalorder %s97, %s98
      %p107 = scmp.eq.s32.totalorder %s19, 0
      %p108 = por %p106, %p107
      %p109 = scmp.ne.s32.totalorder %s97, %s98
      %p110 = scmp.eq.s32.totalorder %s20, 1
      %p111 = por %p109, %p110
      %p113 = scmp.ne.s32.totalorder %s98, %s112
      %p114 = scmp.eq.s32.totalorder %s20, 0
      %p115 = por %p113, %p114
      %s117 = sadd.s32 %s116, 1
      %p120 = scmp.eq.s32.totalorder %s14, 1
      %p121 = scmp.ne.s32.totalorder %s116, %s118
      %p122 = scmp.eq.s32.totalorder %s14, 0
      %p123 = por %p121, %p122
      %p124 = scmp.ne.s32.totalorder %s116, %s118
      %p125 = scmp.eq.s32.totalorder %s19, 1
      %p126 = por %p124, %p125
      %p127 = scmp.ne.s32.totalorder %s118, %s119
      %p128 = scmp.eq.s32.totalorder %s19, 0
      %p129 = por %p127, %p128
      %p130 = scmp.ne.s32.totalorder %s118, %s119
      %p131 = scmp.eq.s32.totalorder %s20, 1
      %p132 = por %p130, %p131
      %p134 = scmp.ne.s32.totalorder %s119, %s133
      %p135 = scmp.eq.s32.totalorder %s20, 0
      %p136 = por %p134, %p135
      %s137 = ssub.s32 %s14, %s21
      %p138 = scmp.eq.s32.totalorder %s137, 0
      %s140 = sadd.s32 %s139, 1
      %s141 = scalar_select %p138, %s139, %s140
      %p144 = pneg %p138
      %p145 = scmp.eq.s32.totalorder %s14, 1
      %p146 = por %p144, %p145
      %p147 = scmp.ne.s32.totalorder %s139, %s142
      %p148 = scmp.eq.s32.totalorder %s14, 0
      %p149 = por %p147, %p148
      %p150 = scmp.ne.s32.totalorder %s139, %s142
      %p151 = scmp.eq.s32.totalorder %s19, 1
      %p152 = por %p150, %p151
      %p153 = scmp.ne.s32.totalorder %s142, %s143
      %p154 = scmp.eq.s32.totalorder %s19, 0
      %p155 = por %p153, %p154
      %p156 = scmp.ne.s32.totalorder %s142, %s143
      %p157 = scmp.eq.s32.totalorder %s20, 1
      %p158 = por %p156, %p157
      %p160 = scmp.ne.s32.totalorder %s143, %s159
      %p161 = scmp.eq.s32.totalorder %s20, 0
      %p162 = por %p160, %p161
      %p163 = scmp.le.s32.totalorder 1, %s14
      %p164 = scmp.lt.s32.totalorder %s14, 3
      %p165 = pnand %p163, %p164
      %p166 = pneg %p165
      // Predicated region
      $region9: #{tpu_custom_call.1} parent=5 // pred_check
        _
      $region10: #{tpu_custom_call.1} parent=5 // pred_check_branch
        %168 = sbr.rel (%p165) target = $region12
      $region11: #{tpu_custom_call.1} parent=5 // pred_region
        %s169 = ssub.s32 %s14, 1
        // Predicated region
        $region13: #{tpu_custom_call.1} parent=11 // pred_check
          %p170 = pneg %p87
        $region14: #{tpu_custom_call.1} parent=11 // pred_check_branch
          %172 = sbr.rel (%p170) target = $region16
        $region15: #{tpu_custom_call.1} parent=11 // pred_region
          _
        $region16: #{tpu_custom_call.1} parent=11 // pred_fallthru
          _
        // Predicated region
        $region17: #{tpu_custom_call.1} parent=11 // pred_check
          %p173 = pneg %p108
        $region18: #{tpu_custom_call.1} parent=11 // pred_check_branch
          %175 = sbr.rel (%p173) target = $region20
        $region19: #{tpu_custom_call.1} parent=11 // pred_region
          _
        $region20: #{tpu_custom_call.1} parent=11 // pred_fallthru
          _
        // Predicated region
        $region21: #{tpu_custom_call.1} parent=11 // pred_check
          %p176 = pneg %p129
        $region22: #{tpu_custom_call.1} parent=11 // pred_check_branch
          %178 = sbr.rel (%p176) target = $region24
        $region23: #{tpu_custom_call.1} parent=11 // pred_region
          _
        $region24: #{tpu_custom_call.1} parent=11 // pred_fallthru
          _
      $region12: #{tpu_custom_call.1} parent=5 // pred_fallthru
        _
      %p179 = scmp.lt.s32.totalorder %s14, 2
      // Predicated region
      $region25: #{tpu_custom_call.1} parent=5 // pred_check
        %p180 = pneg %p179
      $region26: #{tpu_custom_call.1} parent=5 // pred_check_branch
        %182 = sbr.rel (%p180) target = $region28
      $region27: #{tpu_custom_call.1} parent=5 // pred_region
        // Predicated region
        $region29: #{tpu_custom_call.1} parent=27 // pred_check
          %p183 = pneg %p34
        $region30: #{tpu_custom_call.1} parent=27 // pred_check_branch
          %185 = sbr.rel (%p183) target = $region32
        $region31: #{tpu_custom_call.1} parent=27 // pred_region
          %s186 = smul.u32 32, %s14
          %p187 = scmp.lt.s32.totalorder %s186, 63
          %s188 = scalar_select %p187, %s186, 63
          %s189 = smul.addr %s188, 4
          %s190 = scalar_lea.vmem %s0, %s189
          %s191 = smul.u32 32, %s14
        $region32: #{tpu_custom_call.1} parent=27 // pred_fallthru
          _
        // Predicated region
        $region33: #{tpu_custom_call.1} parent=27 // pred_check
          %p192 = pneg %p60
        $region34: #{tpu_custom_call.1} parent=27 // pred_check_branch
          %194 = sbr.rel (%p192) target = $region36
        $region35: #{tpu_custom_call.1} parent=27 // pred_region
          %s195 = smul.u32 32, %s14
          %p196 = scmp.lt.s32.totalorder %s195, 63
          %s197 = scalar_select %p196, %s195, 63
          %s198 = smul.addr %s197, 8
          %s199 = scalar_lea.vmem %s1, %s198
          %s200 = smul.u32 32, %s14
        $region36: #{tpu_custom_call.1} parent=27 // pred_fallthru
          _
      $region28: #{tpu_custom_call.1} parent=5 // pred_fallthru
        _
      %p201 = scmp.le.s32.totalorder 1, %s14
      %p202 = scmp.lt.s32.totalorder %s14, 3
      %p203 = pnand %p201, %p202
      %p204 = pneg %p203
      // Predicated region
      $region37: #{tpu_custom_call.1} parent=5 // pred_check
        _
      $region38: #{tpu_custom_call.1} parent=5 // pred_check_branch
        %206 = sbr.rel (%p203) target = $region40
      $region39: #{tpu_custom_call.1} parent=5 // pred_region
        %s207 = ssub.s32 %s14, 1
        %s208 = smul.u32 32, %s19
        %p209 = scmp.lt.s32.totalorder %s208, 63
        %s210 = scalar_select %p209, %s208, 63
        %s211 = smul.addr %s210, 4
        %s212 = scalar_lea.vmem %s0, %s211
        %p213 = pneg %p40
        %p214 = pneg %p37
        %s215 = smul.u32 32, %s19
        %p216 = scmp.lt.s32.totalorder %s215, 63
        %s217 = scalar_select %p216, %s215, 63
        %s218 = smul.addr %s217, 8
        %s219 = scalar_lea.vmem %s1, %s218
        %p220 = pneg %p66
        %p221 = pneg %p63
        %p222 = pneg %p87
        %p223 = pneg %p84
        %p224 = pneg %p108
        %p225 = pneg %p105
        %p226 = pneg %p129
        %p227 = pneg %p126
        %p228 = pneg %p155
        %p229 = pneg %p152
        %s230 = sand.u32 %s142, 1
        %s231 = scalar_lea.sflag [#allocation3], %s230
        %s232 = sand.u32 %s142, 1
        %s233 = smul.addr %s232, 256
        %s234 = scalar_lea.vmem [#allocation2], %s233
        %s235 = smul.u32 32, %s19
        %p236 = scmp.lt.s32.totalorder %s235, 63
        %s237 = scalar_select %p236, %s235, 63
        %s238 = smul.addr %s237, 4
        %s239 = scalar_lea.vmem %s0, %s238
        %s240 = smul.u32 32, %s19
        %s241 = smul.u32 32, %s19
        %p242 = scmp.lt.s32.totalorder %s241, 63
        %s243 = scalar_select %p242, %s241, 63
        %s244 = smul.addr %s243, 8
        %s245 = scalar_lea.vmem %s1, %s244
        %s246 = smul.u32 32, %s19
        %s247 = smul.u32 32, %s19
        %v249 = vld [vmem:[%s239] sm:$0xf]
        %v250 = vld [vmem:[%s239 + $0x4] sm:$0xf]
        %v251 = vld [vmem:[%s239 + $0x8] sm:$0xf]
        %v252 = vld [vmem:[%s239 + $0xc] sm:$0xf]
        %v253 = vld [vmem:[%s239 + $0x10] sm:$0xf]
        %v254 = vld [vmem:[%s239 + $0x14] sm:$0xf]
        %v255 = vld [vmem:[%s239 + $0x18] sm:$0xf]
        %v256 = vld [vmem:[%s239 + $0x1c] sm:$0xf]
        %v257 = vld [vmem:[%s239 + $0x20] sm:$0xf]
        %v258 = vld [vmem:[%s239 + $0x24] sm:$0xf]
        %v259 = vld [vmem:[%s239 + $0x28] sm:$0xf]
        %v260 = vld [vmem:[%s239 + $0x2c] sm:$0xf]
        %v261 = vld [vmem:[%s239 + $0x30] sm:$0xf]
        %v262 = vld [vmem:[%s239 + $0x34] sm:$0xf]
        %v263 = vld [vmem:[%s239 + $0x38] sm:$0xf]
        %v264 = vld [vmem:[%s239 + $0x3c] sm:$0xf]
        %v265 = vld [vmem:[%s239 + $0x40] sm:$0xf]
        %v266 = vld [vmem:[%s239 + $0x44] sm:$0xf]
        %v267 = vld [vmem:[%s239 + $0x48] sm:$0xf]
        %v268 = vld [vmem:[%s239 + $0x4c] sm:$0xf]
        %v269 = vld [vmem:[%s239 + $0x50] sm:$0xf]
        %v270 = vld [vmem:[%s239 + $0x54] sm:$0xf]
        %v271 = vld [vmem:[%s239 + $0x58] sm:$0xf]
        %v272 = vld [vmem:[%s239 + $0x5c] sm:$0xf]
        %v273 = vld [vmem:[%s239 + $0x60] sm:$0xf]
        %v274 = vld [vmem:[%s239 + $0x64] sm:$0xf]
        %v275 = vld [vmem:[%s239 + $0x68] sm:$0xf]
        %v276 = vld [vmem:[%s239 + $0x6c] sm:$0xf]
        %v277 = vld [vmem:[%s239 + $0x70] sm:$0xf]
        %v278 = vld [vmem:[%s239 + $0x74] sm:$0xf]
        %v279 = vld [vmem:[%s239 + $0x78] sm:$0xf]
        %v280 = vld [vmem:[%s239 + $0x7c] sm:$0xf]
        %v281 = vld [vmem:[%s3] sm:$0xf]
        %v282 = vld [vmem:[%s3 + $0x4] sm:$0xf]
        %v283 = vld [vmem:[%s3 + $0x8] sm:$0xf]
        %v284 = vld [vmem:[%s3 + $0xc] sm:$0xf]
        %v285 = vld [vmem:[%s3 + $0x10] sm:$0xf]
        %v286 = vld [vmem:[%s3 + $0x14] sm:$0xf]
        %v287 = vld [vmem:[%s3 + $0x18] sm:$0xf]
        %v288 = vld [vmem:[%s3 + $0x1c] sm:$0xf]
        %v289 = vld [vmem:[%s4] sm:$0x1]
        %v291 = vlaneseq
        %v292 = vshrl.u32 %v291, 7
        %v293 = vsub.s32 0, %v292
        %v294 = vrot.slane %v289, %v293
        %v328 = vunpack.c.l.b16 %v249
        %v329 = vunpack.c.l.b16 %v250
        %v330 = vunpack.c.l.b16 %v251
        %v331 = vunpack.c.l.b16 %v252
        %v332 = vunpack.c.l.b16 %v253
        %v333 = vunpack.c.l.b16 %v254
        %v334 = vunpack.c.l.b16 %v255
        %v335 = vunpack.c.l.b16 %v256
        %v336 = vunpack.c.l.b16 %v257
        %v337 = vunpack.c.l.b16 %v258
        %v338 = vunpack.c.l.b16 %v259
        %v339 = vunpack.c.l.b16 %v260
        %v340 = vunpack.c.l.b16 %v261
        %v341 = vunpack.c.l.b16 %v262
        %v342 = vunpack.c.l.b16 %v263
        %v343 = vunpack.c.l.b16 %v264
        %v344 = vunpack.c.l.b16 %v265
        %v345 = vunpack.c.l.b16 %v266
        %v346 = vunpack.c.l.b16 %v267
        %v347 = vunpack.c.l.b16 %v268
        %v348 = vunpack.c.l.b16 %v269
        %v349 = vunpack.c.l.b16 %v270
        %v350 = vunpack.c.l.b16 %v271
        %v351 = vunpack.c.l.b16 %v272
        %v352 = vunpack.c.l.b16 %v273
        %v353 = vunpack.c.l.b16 %v274
        %v354 = vunpack.c.l.b16 %v275
        %v355 = vunpack.c.l.b16 %v276
        %v356 = vunpack.c.l.b16 %v277
        %v357 = vunpack.c.l.b16 %v278
        %v358 = vunpack.c.l.b16 %v279
        %v359 = vunpack.c.l.b16 %v280
        %v360 = vpack.c.b16 %v329, %v328
        %v361 = vpack.c.b16 %v331, %v330
        %v362 = vpack.c.b16 %v333, %v332
        %v363 = vpack.c.b16 %v335, %v334
        %v364 = vpack.c.b16 %v337, %v336
        %v365 = vpack.c.b16 %v339, %v338
        %v366 = vpack.c.b16 %v341, %v340
        %v367 = vpack.c.b16 %v343, %v342
        %v368 = vpack.c.b16 %v345, %v344
        %v369 = vpack.c.b16 %v347, %v346
        %v370 = vpack.c.b16 %v349, %v348
        %v371 = vpack.c.b16 %v351, %v350
        %v372 = vpack.c.b16 %v353, %v352
        %v373 = vpack.c.b16 %v355, %v354
        %v374 = vpack.c.b16 %v357, %v356
        %v375 = vpack.c.b16 %v359, %v358
        %v384 = vunpack.c.l.b16 %v281
        %v385 = vunpack.c.l.b16 %v282
        %v386 = vunpack.c.l.b16 %v283
        %v387 = vunpack.c.l.b16 %v284
        %v388 = vunpack.c.l.b16 %v285
        %v389 = vunpack.c.l.b16 %v286
        %v390 = vunpack.c.l.b16 %v287
        %v391 = vunpack.c.l.b16 %v288
        %v392 = vpack.c.b16 %v385, %v384
        %v393 = vpack.c.b16 %v387, %v386
        %v394 = vpack.c.b16 %v389, %v388
        %v395 = vpack.c.b16 %v391, %v390
        %vm400 = vcmask 523264
        %v402 = vsel %vm400, %v360, 0
        %v405 = vsel %vm400, %v361, 0
        %v408 = vsel %vm400, %v362, 0
        %v411 = vsel %vm400, %v363, 0
        %v414 = vsel %vm400, %v364, 0
        %v417 = vsel %vm400, %v365, 0
        %v420 = vsel %vm400, %v366, 0
        %v423 = vsel %vm400, %v367, 0
        %v426 = vsel %vm400, %v368, 0
        %v429 = vsel %vm400, %v369, 0
        %v432 = vsel %vm400, %v370, 0
        %v435 = vsel %vm400, %v371, 0
        %v438 = vsel %vm400, %v372, 0
        %v441 = vsel %vm400, %v373, 0
        %v444 = vsel %vm400, %v374, 0
        %v447 = vsel %vm400, %v375, 0
        %449 = vmatprep.subr.bf16.mxu0 0
        %450 = vmatpush1.bf16.msra.mxu0 %v392
        %451 = vmatprep.subr.bf16.mxu0 0
        %452 = vmatpush1.bf16.msra.mxu0 %v393
        %453 = vmatprep.subr.bf16.mxu0 0
        %454 = vmatpush1.bf16.msra.mxu0 %v394
        %455 = vmatprep.subr.bf16.mxu0 0
        %456 = vmatpush1.bf16.msra.mxu0 %v395
        %457 = vmatprep.subr.bf16.mxu0 0
        %458 = vmatpush1.bf16.msra.mxu0 0
        %459 = vmatprep.subr.bf16.mxu0 0
        %460 = vmatpush1.bf16.msra.mxu0 0
        %461 = vmatprep.subr.bf16.mxu0 0
        %462 = vmatpush1.bf16.msra.mxu0 0
        %463 = vmatprep.subr.bf16.mxu0 0
        %464 = vmatpush1.bf16.msra.mxu0 0
        %465 = vmatprep.subr.bf16.mxu0 0
        %466 = vmatpush1.bf16.msra.mxu0 0
        %467 = vmatprep.subr.bf16.mxu0 0
        %468 = vmatpush1.bf16.msra.mxu0 0
        %469 = vmatprep.subr.bf16.mxu0 0
        %470 = vmatpush1.bf16.msra.mxu0 0
        %471 = vmatprep.subr.bf16.mxu0 0
        %472 = vmatpush1.bf16.msra.mxu0 0
        %473 = vmatprep.subr.bf16.mxu0 0
        %474 = vmatpush1.bf16.msra.mxu0 0
        %475 = vmatprep.subr.bf16.mxu0 0
        %476 = vmatpush1.bf16.msra.mxu0 0
        %477 = vmatprep.subr.bf16.mxu0 0
        %478 = vmatpush1.bf16.msra.mxu0 0
        %479 = vmatprep.subr.bf16.mxu0 0
        %480 = vmatpush1.bf16.msra.mxu0 0
        %481 = vmatprep.mubr.bf16.mxu0 0
        %482 = vmatmul.mubr.bf16.gmra.mrb[0].mxu0 %v402
        %v483 = vpop.f32.mrb[0].mxu0
        %v484 = vadd.f32 %v294, %v483
        %v485 = vpop.f32.mrb[0].mxu0
        %v486 = vpop.f32.mrb[0].mxu0
        %v487 = vadd.f32 %v294, %v486
        %v488 = vpop.f32.mrb[0].mxu0
        %489 = vmatprep.mubr.bf16.mxu0 0
        %490 = vmatmul.mubr.bf16.gmra.mrb[0].mxu0 %v405
        %v491 = vpop.f32.mrb[0].mxu0
        %v492 = vadd.f32 %v294, %v491
        %v493 = vpop.f32.mrb[0].mxu0
        %v494 = vpop.f32.mrb[0].mxu0
        %v495 = vadd.f32 %v294, %v494
        %v496 = vpop.f32.mrb[0].mxu0
        %497 = vmatprep.mubr.bf16.mxu0 0
        %498 = vmatmul.mubr.bf16.gmra.mrb[0].mxu0 %v408
        %v499 = vpop.f32.mrb[0].mxu0
        %v500 = vadd.f32 %v294, %v499
        %v501 = vpop.f32.mrb[0].mxu0
        %v502 = vpop.f32.mrb[0].mxu0
        %v503 = vadd.f32 %v294, %v502
        %v504 = vpop.f32.mrb[0].mxu0
        %505 = vmatprep.mubr.bf16.mxu0 0
        %506 = vmatmul.mubr.bf16.gmra.mrb[0].mxu0 %v411
        %v507 = vpop.f32.mrb[0].mxu0
        %v508 = vadd.f32 %v294, %v507
        %v509 = vpop.f32.mrb[0].mxu0
        %v510 = vpop.f32.mrb[0].mxu0
        %v511 = vadd.f32 %v294, %v510
        %v512 = vpop.f32.mrb[0].mxu0
        %513 = vmatprep.mubr.bf16.mxu0 0
        %514 = vmatmul.mubr.bf16.gmra.mrb[0].mxu0 %v414
        %v515 = vpop.f32.mrb[0].mxu0
        %v516 = vadd.f32 %v294, %v515
        %v517 = vpop.f32.mrb[0].mxu0
        %v518 = vpop.f32.mrb[0].mxu0
        %v519 = vadd.f32 %v294, %v518
        %v520 = vpop.f32.mrb[0].mxu0
        %521 = vmatprep.mubr.bf16.mxu0 0
        %522 = vmatmul.mubr.bf16.gmra.mrb[0].mxu0 %v417
        %v523 = vpop.f32.mrb[0].mxu0
        %v524 = vadd.f32 %v294, %v523
        %v525 = vpop.f32.mrb[0].mxu0
        %v526 = vpop.f32.mrb[0].mxu0
        %v527 = vadd.f32 %v294, %v526
        %v528 = vpop.f32.mrb[0].mxu0
        %529 = vmatprep.mubr.bf16.mxu0 0
        %530 = vmatmul.mubr.bf16.gmra.mrb[0].mxu0 %v420
        %v531 = vpop.f32.mrb[0].mxu0
        %v532 = vadd.f32 %v294, %v531
        %v533 = vpop.f32.mrb[0].mxu0
        %v534 = vpop.f32.mrb[0].mxu0
        %v535 = vadd.f32 %v294, %v534
        %v536 = vpop.f32.mrb[0].mxu0
        %537 = vmatprep.mubr.bf16.mxu0 0
        %538 = vmatmul.mubr.bf16.gmra.mrb[0].mxu0 %v423
        %v539 = vpop.f32.mrb[0].mxu0
        %v540 = vadd.f32 %v294, %v539
        %v541 = vpop.f32.mrb[0].mxu0
        %v542 = vpop.f32.mrb[0].mxu0
        %v543 = vadd.f32 %v294, %v542
        %v544 = vpop.f32.mrb[0].mxu0
        %545 = vmatprep.mubr.bf16.mxu0 0
        %546 = vmatmul.mubr.bf16.gmra.mrb[0].mxu0 %v426
        %v547 = vpop.f32.mrb[0].mxu0
        %v548 = vadd.f32 %v294, %v547
        %v549 = vpop.f32.mrb[0].mxu0
        %v550 = vpop.f32.mrb[0].mxu0
        %v551 = vadd.f32 %v294, %v550
        %v552 = vpop.f32.mrb[0].mxu0
        %553 = vmatprep.mubr.bf16.mxu0 0
        %554 = vmatmul.mubr.bf16.gmra.mrb[0].mxu0 %v429
        %v555 = vpop.f32.mrb[0].mxu0
        %v556 = vadd.f32 %v294, %v555
        %v557 = vpop.f32.mrb[0].mxu0
        %v558 = vpop.f32.mrb[0].mxu0
        %v559 = vadd.f32 %v294, %v558
        %v560 = vpop.f32.mrb[0].mxu0
        %561 = vmatprep.mubr.bf16.mxu0 0
        %562 = vmatmul.mubr.bf16.gmra.mrb[0].mxu0 %v432
        %v563 = vpop.f32.mrb[0].mxu0
        %v564 = vadd.f32 %v294, %v563
        %v565 = vpop.f32.mrb[0].mxu0
        %v566 = vpop.f32.mrb[0].mxu0
        %v567 = vadd.f32 %v294, %v566
        %v568 = vpop.f32.mrb[0].mxu0
        %569 = vmatprep.mubr.bf16.mxu0 0
        %570 = vmatmul.mubr.bf16.gmra.mrb[0].mxu0 %v435
        %v571 = vpop.f32.mrb[0].mxu0
        %v572 = vadd.f32 %v294, %v571
        %v573 = vpop.f32.mrb[0].mxu0
        %v574 = vpop.f32.mrb[0].mxu0
        %v575 = vadd.f32 %v294, %v574
        %v576 = vpop.f32.mrb[0].mxu0
        %577 = vmatprep.mubr.bf16.mxu0 0
        %578 = vmatmul.mubr.bf16.gmra.mrb[0].mxu0 %v438
        %v579 = vpop.f32.mrb[0].mxu0
        %v580 = vadd.f32 %v294, %v579
        %v581 = vpop.f32.mrb[0].mxu0
        %v582 = vpop.f32.mrb[0].mxu0
        %v583 = vadd.f32 %v294, %v582
        %v584 = vpop.f32.mrb[0].mxu0
        %585 = vmatprep.mubr.bf16.mxu0 0
        %586 = vmatmul.mubr.bf16.gmra.mrb[0].mxu0 %v441
        %v587 = vpop.f32.mrb[0].mxu0
        %v588 = vadd.f32 %v294, %v587
        %v589 = vpop.f32.mrb[0].mxu0
        %v590 = vpop.f32.mrb[0].mxu0
        %v591 = vadd.f32 %v294, %v590
        %v592 = vpop.f32.mrb[0].mxu0
        %593 = vmatprep.mubr.bf16.mxu0 0
        %594 = vmatmul.mubr.bf16.gmra.mrb[0].mxu0 %v444
        %v595 = vpop.f32.mrb[0].mxu0
        %v596 = vadd.f32 %v294, %v595
        %v597 = vpop.f32.mrb[0].mxu0
        %v598 = vpop.f32.mrb[0].mxu0
        %v599 = vadd.f32 %v294, %v598
        %v600 = vpop.f32.mrb[0].mxu0
        %601 = vmatprep.mubr.bf16.mxu0 0
        %602 = vmatmul.mubr.bf16.gmra.mrb[0].mxu0 %v447
        %v603 = vpop.f32.mrb[0].mxu0
        %v604 = vadd.f32 %v294, %v603
        %v605 = vpop.f32.mrb[0].mxu0
        %v606 = vpop.f32.mrb[0].mxu0
        %v607 = vadd.f32 %v294, %v606
        %v608 = vpop.f32.mrb[0].mxu0
        %609 = vdwg.mxu0
        %v610 = vld [vmem:[%s245] sm:$0xff]
        %v611 = vld [vmem:[%s245 + $0x8] sm:$0xff]
        %v612 = vld [vmem:[%s245 + $0x10] sm:$0xff]
        %v613 = vld [vmem:[%s245 + $0x18] sm:$0xff]
        %v614 = vld [vmem:[%s245 + $0x20] sm:$0xff]
        %v615 = vld [vmem:[%s245 + $0x28] sm:$0xff]
        %v616 = vld [vmem:[%s245 + $0x30] sm:$0xff]
        %v617 = vld [vmem:[%s245 + $0x38] sm:$0xff]
        %v618 = vld [vmem:[%s245 + $0x40] sm:$0xff]
        %v619 = vld [vmem:[%s245 + $0x48] sm:$0xff]
        %v620 = vld [vmem:[%s245 + $0x50] sm:$0xff]
        %v621 = vld [vmem:[%s245 + $0x58] sm:$0xff]
        %v622 = vld [vmem:[%s245 + $0x60] sm:$0xff]
        %v623 = vld [vmem:[%s245 + $0x68] sm:$0xff]
        %v624 = vld [vmem:[%s245 + $0x70] sm:$0xff]
        %v625 = vld [vmem:[%s245 + $0x78] sm:$0xff]
        %v626 = vld [vmem:[%s245 + $0x80] sm:$0xff]
        %v627 = vld [vmem:[%s245 + $0x88] sm:$0xff]
        %v628 = vld [vmem:[%s245 + $0x90] sm:$0xff]
        %v629 = vld [vmem:[%s245 + $0x98] sm:$0xff]
        %v630 = vld [vmem:[%s245 + $0xa0] sm:$0xff]
        %v631 = vld [vmem:[%s245 + $0xa8] sm:$0xff]
        %v632 = vld [vmem:[%s245 + $0xb0] sm:$0xff]
        %v633 = vld [vmem:[%s245 + $0xb8] sm:$0xff]
        %v634 = vld [vmem:[%s245 + $0xc0] sm:$0xff]
        %v635 = vld [vmem:[%s245 + $0xc8] sm:$0xff]
        %v636 = vld [vmem:[%s245 + $0xd0] sm:$0xff]
        %v637 = vld [vmem:[%s245 + $0xd8] sm:$0xff]
        %v638 = vld [vmem:[%s245 + $0xe0] sm:$0xff]
        %v639 = vld [vmem:[%s245 + $0xe8] sm:$0xff]
        %v640 = vld [vmem:[%s245 + $0xf0] sm:$0xff]
        %v641 = vld [vmem:[%s245 + $0xf8] sm:$0xff]
        %v642 = vxor.u32 %v484, 2147483648
        %v643 = vxor.u32 %v487, 2147483648
        %v644 = vxor.u32 %v492, 2147483648
        %v645 = vxor.u32 %v495, 2147483648
        %v646 = vxor.u32 %v500, 2147483648
        %v647 = vxor.u32 %v503, 2147483648
        %v648 = vxor.u32 %v508, 2147483648
        %v649 = vxor.u32 %v511, 2147483648
        %v650 = vxor.u32 %v516, 2147483648
        %v651 = vxor.u32 %v519, 2147483648
        %v652 = vxor.u32 %v524, 2147483648
        %v653 = vxor.u32 %v527, 2147483648
        %v654 = vxor.u32 %v532, 2147483648
        %v655 = vxor.u32 %v535, 2147483648
        %v656 = vxor.u32 %v540, 2147483648
        %v657 = vxor.u32 %v543, 2147483648
        %v658 = vxor.u32 %v548, 2147483648
        %v659 = vxor.u32 %v551, 2147483648
        %v660 = vxor.u32 %v556, 2147483648
        %v661 = vxor.u32 %v559, 2147483648
        %v662 = vxor.u32 %v564, 2147483648
        %v663 = vxor.u32 %v567, 2147483648
        %v664 = vxor.u32 %v572, 2147483648
        %v665 = vxor.u32 %v575, 2147483648
        %v666 = vxor.u32 %v580, 2147483648
        %v667 = vxor.u32 %v583, 2147483648
        %v668 = vxor.u32 %v588, 2147483648
        %v669 = vxor.u32 %v591, 2147483648
        %v670 = vxor.u32 %v596, 2147483648
        %v671 = vxor.u32 %v599, 2147483648
        %v672 = vxor.u32 %v604, 2147483648
        %v673 = vxor.u32 %v607, 2147483648
        %v674 = vmul.f32 %v642, 1.442695
        %v675 = vpow.pop %v674
        %v676 = vmul.f32 %v643, 1.442695
        %v677 = vpow.pop %v676
        %v678 = vmul.f32 %v644, 1.442695
        %v679 = vpow.pop %v678
        %v680 = vmul.f32 %v645, 1.442695
        %v681 = vpow.pop %v680
        %v682 = vmul.f32 %v646, 1.442695
        %v683 = vpow.pop %v682
        %v684 = vmul.f32 %v647, 1.442695
        %v685 = vpow.pop %v684
        %v686 = vmul.f32 %v648, 1.442695
        %v687 = vpow.pop %v686
        %v688 = vmul.f32 %v649, 1.442695
        %v689 = vpow.pop %v688
        %v690 = vmul.f32 %v650, 1.442695
        %v691 = vpow.pop %v690
        %v692 = vmul.f32 %v651, 1.442695
        %v693 = vpow.pop %v692
        %v694 = vmul.f32 %v652, 1.442695
        %v695 = vpow.pop %v694
        %v696 = vmul.f32 %v653, 1.442695
        %v697 = vpow.pop %v696
        %v698 = vmul.f32 %v654, 1.442695
        %v699 = vpow.pop %v698
        %v700 = vmul.f32 %v655, 1.442695
        %v701 = vpow.pop %v700
        %v702 = vmul.f32 %v656, 1.442695
        %v703 = vpow.pop %v702
        %v704 = vmul.f32 %v657, 1.442695
        %v705 = vpow.pop %v704
        %v706 = vmul.f32 %v658, 1.442695
        %v707 = vpow.pop %v706
        %v708 = vmul.f32 %v659, 1.442695
        %v709 = vpow.pop %v708
        %v710 = vmul.f32 %v660, 1.442695
        %v711 = vpow.pop %v710
        %v712 = vmul.f32 %v661, 1.442695
        %v713 = vpow.pop %v712
        %v714 = vmul.f32 %v662, 1.442695
        %v715 = vpow.pop %v714
        %v716 = vmul.f32 %v663, 1.442695
        %v717 = vpow.pop %v716
        %v718 = vmul.f32 %v664, 1.442695
        %v719 = vpow.pop %v718
        %v720 = vmul.f32 %v665, 1.442695
        %v721 = vpow.pop %v720
        %v722 = vmul.f32 %v666, 1.442695
        %v723 = vpow.pop %v722
        %v724 = vmul.f32 %v667, 1.442695
        %v725 = vpow.pop %v724
        %v726 = vmul.f32 %v668, 1.442695
        %v727 = vpow.pop %v726
        %v728 = vmul.f32 %v669, 1.442695
        %v729 = vpow.pop %v728
        %v730 = vmul.f32 %v670, 1.442695
        %v731 = vpow.pop %v730
        %v732 = vmul.f32 %v671, 1.442695
        %v733 = vpow.pop %v732
        %v734 = vmul.f32 %v672, 1.442695
        %v735 = vpow.pop %v734
        %v736 = vmul.f32 %v673, 1.442695
        %v737 = vpow.pop %v736
        %v738 = vadd.f32 %v675, 1.0
        %v739 = vadd.f32 %v677, 1.0
        %v740 = vadd.f32 %v679, 1.0
        %v741 = vadd.f32 %v681, 1.0
        %v742 = vadd.f32 %v683, 1.0
        %v743 = vadd.f32 %v685, 1.0
        %v744 = vadd.f32 %v687, 1.0
        %v745 = vadd.f32 %v689, 1.0
        %v746 = vadd.f32 %v691, 1.0
        %v747 = vadd.f32 %v693, 1.0
        %v748 = vadd.f32 %v695, 1.0
        %v749 = vadd.f32 %v697, 1.0
        %v750 = vadd.f32 %v699, 1.0
        %v751 = vadd.f32 %v701, 1.0
        %v752 = vadd.f32 %v703, 1.0
        %v753 = vadd.f32 %v705, 1.0
        %v754 = vadd.f32 %v707, 1.0
        %v755 = vadd.f32 %v709, 1.0
        %v756 = vadd.f32 %v711, 1.0
        %v757 = vadd.f32 %v713, 1.0
        %v758 = vadd.f32 %v715, 1.0
        %v759 = vadd.f32 %v717, 1.0
        %v760 = vadd.f32 %v719, 1.0
        %v761 = vadd.f32 %v721, 1.0
        %v762 = vadd.f32 %v723, 1.0
        %v763 = vadd.f32 %v725, 1.0
        %v764 = vadd.f32 %v727, 1.0
        %v765 = vadd.f32 %v729, 1.0
        %v766 = vadd.f32 %v731, 1.0
        %v767 = vadd.f32 %v733, 1.0
        %v768 = vadd.f32 %v735, 1.0
        %v769 = vadd.f32 %v737, 1.0
        %v770 = vrcp.pop %v738
        %v771 = vmul.f32 1.0, %v770
        %v772 = vrcp.pop %v739
        %v773 = vmul.f32 1.0, %v772
        %v774 = vrcp.pop %v740
        %v775 = vmul.f32 1.0, %v774
        %v776 = vrcp.pop %v741
        %v777 = vmul.f32 1.0, %v776
        %v778 = vrcp.pop %v742
        %v779 = vmul.f32 1.0, %v778
        %v780 = vrcp.pop %v743
        %v781 = vmul.f32 1.0, %v780
        %v782 = vrcp.pop %v744
        %v783 = vmul.f32 1.0, %v782
        %v784 = vrcp.pop %v745
        %v785 = vmul.f32 1.0, %v784
        %v786 = vrcp.pop %v746
        %v787 = vmul.f32 1.0, %v786
        %v788 = vrcp.pop %v747
        %v789 = vmul.f32 1.0, %v788
        %v790 = vrcp.pop %v748
        %v791 = vmul.f32 1.0, %v790
        %v792 = vrcp.pop %v749
        %v793 = vmul.f32 1.0, %v792
        %v794 = vrcp.pop %v750
        %v795 = vmul.f32 1.0, %v794
        %v796 = vrcp.pop %v751
        %v797 = vmul.f32 1.0, %v796
        %v798 = vrcp.pop %v752
        %v799 = vmul.f32 1.0, %v798
        %v800 = vrcp.pop %v753
        %v801 = vmul.f32 1.0, %v800
        %v802 = vrcp.pop %v754
        %v803 = vmul.f32 1.0, %v802
        %v804 = vrcp.pop %v755
        %v805 = vmul.f32 1.0, %v804
        %v806 = vrcp.pop %v756
        %v807 = vmul.f32 1.0, %v806
        %v808 = vrcp.pop %v757
        %v809 = vmul.f32 1.0, %v808
        %v810 = vrcp.pop %v758
        %v811 = vmul.f32 1.0, %v810
        %v812 = vrcp.pop %v759
        %v813 = vmul.f32 1.0, %v812
        %v814 = vrcp.pop %v760
        %v815 = vmul.f32 1.0, %v814
        %v816 = vrcp.pop %v761
        %v817 = vmul.f32 1.0, %v816
        %v818 = vrcp.pop %v762
        %v819 = vmul.f32 1.0, %v818
        %v820 = vrcp.pop %v763
        %v821 = vmul.f32 1.0, %v820
        %v822 = vrcp.pop %v764
        %v823 = vmul.f32 1.0, %v822
        %v824 = vrcp.pop %v765
        %v825 = vmul.f32 1.0, %v824
        %v826 = vrcp.pop %v766
        %v827 = vmul.f32 1.0, %v826
        %v828 = vrcp.pop %v767
        %v829 = vmul.f32 1.0, %v828
        %v830 = vrcp.pop %v768
        %v831 = vmul.f32 1.0, %v830
        %v832 = vrcp.pop %v769
        %v833 = vmul.f32 1.0, %v832
        %v834 = vmul.f32 %v771, 2.0
        %v835 = vmul.f32 %v773, 2.0
        %v836 = vmul.f32 %v775, 2.0
        %v837 = vmul.f32 %v777, 2.0
        %v838 = vmul.f32 %v779, 2.0
        %v839 = vmul.f32 %v781, 2.0
        %v840 = vmul.f32 %v783, 2.0
        %v841 = vmul.f32 %v785, 2.0
        %v842 = vmul.f32 %v787, 2.0
        %v843 = vmul.f32 %v789, 2.0
        %v844 = vmul.f32 %v791, 2.0
        %v845 = vmul.f32 %v793, 2.0
        %v846 = vmul.f32 %v795, 2.0
        %v847 = vmul.f32 %v797, 2.0
        %v848 = vmul.f32 %v799, 2.0
        %v849 = vmul.f32 %v801, 2.0
        %v850 = vmul.f32 %v803, 2.0
        %v851 = vmul.f32 %v805, 2.0
        %v852 = vmul.f32 %v807, 2.0
        %v853 = vmul.f32 %v809, 2.0
        %v854 = vmul.f32 %v811, 2.0
        %v855 = vmul.f32 %v813, 2.0
        %v856 = vmul.f32 %v815, 2.0
        %v857 = vmul.f32 %v817, 2.0
        %v858 = vmul.f32 %v819, 2.0
        %v859 = vmul.f32 %v821, 2.0
        %v860 = vmul.f32 %v823, 2.0
        %v861 = vmul.f32 %v825, 2.0
        %v862 = vmul.f32 %v827, 2.0
        %v863 = vmul.f32 %v829, 2.0
        %v864 = vmul.f32 %v831, 2.0
        %v865 = vmul.f32 %v833, 2.0
        %v866 = vsub.f32 %v834, 0.5
        %v867 = vsub.f32 %v835, 0.5
        %v868 = vsub.f32 %v836, 0.5
        %v869 = vsub.f32 %v837, 0.5
        %v870 = vsub.f32 %v838, 0.5
        %v871 = vsub.f32 %v839, 0.5
        %v872 = vsub.f32 %v840, 0.5
        %v873 = vsub.f32 %v841, 0.5
        %v874 = vsub.f32 %v842, 0.5
        %v875 = vsub.f32 %v843, 0.5
        %v876 = vsub.f32 %v844, 0.5
        %v877 = vsub.f32 %v845, 0.5
        %v878 = vsub.f32 %v846, 0.5
        %v879 = vsub.f32 %v847, 0.5
        %v880 = vsub.f32 %v848, 0.5
        %v881 = vsub.f32 %v849, 0.5
        %v882 = vsub.f32 %v850, 0.5
        %v883 = vsub.f32 %v851, 0.5
        %v884 = vsub.f32 %v852, 0.5
        %v885 = vsub.f32 %v853, 0.5
        %v886 = vsub.f32 %v854, 0.5
        %v887 = vsub.f32 %v855, 0.5
        %v888 = vsub.f32 %v856, 0.5
        %v889 = vsub.f32 %v857, 0.5
        %v890 = vsub.f32 %v858, 0.5
        %v891 = vsub.f32 %v859, 0.5
        %v892 = vsub.f32 %v860, 0.5
        %v893 = vsub.f32 %v861, 0.5
        %v894 = vsub.f32 %v862, 0.5
        %v895 = vsub.f32 %v863, 0.5
        %v896 = vsub.f32 %v864, 0.5
        %v897 = vsub.f32 %v865, 0.5
        %v898 = vadd.f32 %v866, %v610
        %v899 = vadd.f32 %v867, %v611
        %v900 = vadd.f32 %v868, %v612
        %v901 = vadd.f32 %v869, %v613
        %v902 = vadd.f32 %v870, %v614
        %v903 = vadd.f32 %v871, %v615
        %v904 = vadd.f32 %v872, %v616
        %v905 = vadd.f32 %v873, %v617
        %v906 = vadd.f32 %v874, %v618
        %v907 = vadd.f32 %v875, %v619
        %v908 = vadd.f32 %v876, %v620
        %v909 = vadd.f32 %v877, %v621
        %v910 = vadd.f32 %v878, %v622
        %v911 = vadd.f32 %v879, %v623
        %v912 = vadd.f32 %v880, %v624
        %v913 = vadd.f32 %v881, %v625
        %v914 = vadd.f32 %v882, %v626
        %v915 = vadd.f32 %v883, %v627
        %v916 = vadd.f32 %v884, %v628
        %v917 = vadd.f32 %v885, %v629
        %v918 = vadd.f32 %v886, %v630
        %v919 = vadd.f32 %v887, %v631
        %v920 = vadd.f32 %v888, %v632
        %v921 = vadd.f32 %v889, %v633
        %v922 = vadd.f32 %v890, %v634
        %v923 = vadd.f32 %v891, %v635
        %v924 = vadd.f32 %v892, %v636
        %v925 = vadd.f32 %v893, %v637
        %v926 = vadd.f32 %v894, %v638
        %v927 = vadd.f32 %v895, %v639
        %v928 = vadd.f32 %v896, %v640
        %v929 = vadd.f32 %v897, %v641
        %v930 = vmul.f32 %v898, 8.0
        %v931 = vmul.f32 %v899, 8.0
        %v932 = vmul.f32 %v900, 8.0
        %v933 = vmul.f32 %v901, 8.0
        %v934 = vmul.f32 %v902, 8.0
        %v935 = vmul.f32 %v903, 8.0
        %v936 = vmul.f32 %v904, 8.0
        %v937 = vmul.f32 %v905, 8.0
        %v938 = vmul.f32 %v906, 8.0
        %v939 = vmul.f32 %v907, 8.0
        %v940 = vmul.f32 %v908, 8.0
        %v941 = vmul.f32 %v909, 8.0
        %v942 = vmul.f32 %v910, 8.0
        %v943 = vmul.f32 %v911, 8.0
        %v944 = vmul.f32 %v912, 8.0
        %v945 = vmul.f32 %v913, 8.0
        %v946 = vmul.f32 %v914, 8.0
        %v947 = vmul.f32 %v915, 8.0
        %v948 = vmul.f32 %v916, 8.0
        %v949 = vmul.f32 %v917, 8.0
        %v950 = vmul.f32 %v918, 8.0
        %v951 = vmul.f32 %v919, 8.0
        %v952 = vmul.f32 %v920, 8.0
        %v953 = vmul.f32 %v921, 8.0
        %v954 = vmul.f32 %v922, 8.0
        %v955 = vmul.f32 %v923, 8.0
        %v956 = vmul.f32 %v924, 8.0
        %v957 = vmul.f32 %v925, 8.0
        %v958 = vmul.f32 %v926, 8.0
        %v959 = vmul.f32 %v927, 8.0
        %v960 = vmul.f32 %v928, 8.0
        %v961 = vmul.f32 %v929, 8.0
        %v962 = vmul.f32 %v484, 1.442695
        %v963 = vpow.pop %v962
        %v964 = vmul.f32 %v487, 1.442695
        %v965 = vpow.pop %v964
        %v966 = vmul.f32 %v492, 1.442695
        %v967 = vpow.pop %v966
        %v968 = vmul.f32 %v495, 1.442695
        %v969 = vpow.pop %v968
        %v970 = vmul.f32 %v500, 1.442695
        %v971 = vpow.pop %v970
        %v972 = vmul.f32 %v503, 1.442695
        %v973 = vpow.pop %v972
        %v974 = vmul.f32 %v508, 1.442695
        %v975 = vpow.pop %v974
        %v976 = vmul.f32 %v511, 1.442695
        %v977 = vpow.pop %v976
        %v978 = vmul.f32 %v516, 1.442695
        %v979 = vpow.pop %v978
        %v980 = vmul.f32 %v519, 1.442695
        %v981 = vpow.pop %v980
        %v982 = vmul.f32 %v524, 1.442695
        %v983 = vpow.pop %v982
        %v984 = vmul.f32 %v527, 1.442695
        %v985 = vpow.pop %v984
        %v986 = vmul.f32 %v532, 1.442695
        %v987 = vpow.pop %v986
        %v988 = vmul.f32 %v535, 1.442695
        %v989 = vpow.pop %v988
        %v990 = vmul.f32 %v540, 1.442695
        %v991 = vpow.pop %v990
        %v992 = vmul.f32 %v543, 1.442695
        %v993 = vpow.pop %v992
        %v994 = vmul.f32 %v548, 1.442695
        %v995 = vpow.pop %v994
        %v996 = vmul.f32 %v551, 1.442695
        %v997 = vpow.pop %v996
        %v998 = vmul.f32 %v556, 1.442695
        %v999 = vpow.pop %v998
        %v1000 = vmul.f32 %v559, 1.442695
        %v1001 = vpow.pop %v1000
        %v1002 = vmul.f32 %v564, 1.442695
        %v1003 = vpow.pop %v1002
        %v1004 = vmul.f32 %v567, 1.442695
        %v1005 = vpow.pop %v1004
        %v1006 = vmul.f32 %v572, 1.442695
        %v1007 = vpow.pop %v1006
        %v1008 = vmul.f32 %v575, 1.442695
        %v1009 = vpow.pop %v1008
        %v1010 = vmul.f32 %v580, 1.442695
        %v1011 = vpow.pop %v1010
        %v1012 = vmul.f32 %v583, 1.442695
        %v1013 = vpow.pop %v1012
        %v1014 = vmul.f32 %v588, 1.442695
        %v1015 = vpow.pop %v1014
        %v1016 = vmul.f32 %v591, 1.442695
        %v1017 = vpow.pop %v1016
        %v1018 = vmul.f32 %v596, 1.442695
        %v1019 = vpow.pop %v1018
        %v1020 = vmul.f32 %v599, 1.442695
        %v1021 = vpow.pop %v1020
        %v1022 = vmul.f32 %v604, 1.442695
        %v1023 = vpow.pop %v1022
        %v1024 = vmul.f32 %v607, 1.442695
        %v1025 = vpow.pop %v1024
        %v1026 = vmul.f32 %v963, 0.5
        %v1027 = vmul.f32 %v965, 0.5
        %v1028 = vmul.f32 %v967, 0.5
        %v1029 = vmul.f32 %v969, 0.5
        %v1030 = vmul.f32 %v971, 0.5
        %v1031 = vmul.f32 %v973, 0.5
        %v1032 = vmul.f32 %v975, 0.5
        %v1033 = vmul.f32 %v977, 0.5
        %v1034 = vmul.f32 %v979, 0.5
        %v1035 = vmul.f32 %v981, 0.5
        %v1036 = vmul.f32 %v983, 0.5
        %v1037 = vmul.f32 %v985, 0.5
        %v1038 = vmul.f32 %v987, 0.5
        %v1039 = vmul.f32 %v989, 0.5
        %v1040 = vmul.f32 %v991, 0.5
        %v1041 = vmul.f32 %v993, 0.5
        %v1042 = vmul.f32 %v995, 0.5
        %v1043 = vmul.f32 %v997, 0.5
        %v1044 = vmul.f32 %v999, 0.5
        %v1045 = vmul.f32 %v1001, 0.5
        %v1046 = vmul.f32 %v1003, 0.5
        %v1047 = vmul.f32 %v1005, 0.5
        %v1048 = vmul.f32 %v1007, 0.5
        %v1049 = vmul.f32 %v1009, 0.5
        %v1050 = vmul.f32 %v1011, 0.5
        %v1051 = vmul.f32 %v1013, 0.5
        %v1052 = vmul.f32 %v1015, 0.5
        %v1053 = vmul.f32 %v1017, 0.5
        %v1054 = vmul.f32 %v1019, 0.5
        %v1055 = vmul.f32 %v1021, 0.5
        %v1056 = vmul.f32 %v1023, 0.5
        %v1057 = vmul.f32 %v1025, 0.5
        %v1058 = vmul.f32 %v1026, %v610
        %v1059 = vmul.f32 %v1027, %v611
        %v1060 = vmul.f32 %v1028, %v612
        %v1061 = vmul.f32 %v1029, %v613
        %v1062 = vmul.f32 %v1030, %v614
        %v1063 = vmul.f32 %v1031, %v615
        %v1064 = vmul.f32 %v1032, %v616
        %v1065 = vmul.f32 %v1033, %v617
        %v1066 = vmul.f32 %v1034, %v618
        %v1067 = vmul.f32 %v1035, %v619
        %v1068 = vmul.f32 %v1036, %v620
        %v1069 = vmul.f32 %v1037, %v621
        %v1070 = vmul.f32 %v1038, %v622
        %v1071 = vmul.f32 %v1039, %v623
        %v1072 = vmul.f32 %v1040, %v624
        %v1073 = vmul.f32 %v1041, %v625
        %v1074 = vmul.f32 %v1042, %v626
        %v1075 = vmul.f32 %v1043, %v627
        %v1076 = vmul.f32 %v1044, %v628
        %v1077 = vmul.f32 %v1045, %v629
        %v1078 = vmul.f32 %v1046, %v630
        %v1079 = vmul.f32 %v1047, %v631
        %v1080 = vmul.f32 %v1048, %v632
        %v1081 = vmul.f32 %v1049, %v633
        %v1082 = vmul.f32 %v1050, %v634
        %v1083 = vmul.f32 %v1051, %v635
        %v1084 = vmul.f32 %v1052, %v636
        %v1085 = vmul.f32 %v1053, %v637
        %v1086 = vmul.f32 %v1054, %v638
        %v1087 = vmul.f32 %v1055, %v639
        %v1088 = vmul.f32 %v1056, %v640
        %v1089 = vmul.f32 %v1057, %v641
        %1122 = vrot.lane.b32.xlu0 %v1058, 116
        %v1123 = vpop.permute.xlu0 %1122
        %1124 = vrot.lane.b32.xlu0 %v1059, 116
        %v1125 = vpop.permute.xlu0 %1124
        %1126 = vrot.lane.b32.xlu0 %v1060, 116
        %v1127 = vpop.permute.xlu0 %1126
        %1128 = vrot.lane.b32.xlu0 %v1061, 116
        %v1129 = vpop.permute.xlu0 %1128
        %1130 = vrot.lane.b32.xlu0 %v1062, 116
        %v1131 = vpop.permute.xlu0 %1130
        %1132 = vrot.lane.b32.xlu0 %v1063, 116
        %v1133 = vpop.permute.xlu0 %1132
        %1134 = vrot.lane.b32.xlu0 %v1064, 116
        %v1135 = vpop.permute.xlu0 %1134
        %1136 = vrot.lane.b32.xlu0 %v1065, 116
        %v1137 = vpop.permute.xlu0 %1136
        %1138 = vrot.lane.b32.xlu0 %v1066, 116
        %v1139 = vpop.permute.xlu0 %1138
        %1140 = vrot.lane.b32.xlu0 %v1067, 116
        %v1141 = vpop.permute.xlu0 %1140
        %1142 = vrot.lane.b32.xlu0 %v1068, 116
        %v1143 = vpop.permute.xlu0 %1142
        %1144 = vrot.lane.b32.xlu0 %v1069, 116
        %v1145 = vpop.permute.xlu0 %1144
        %1146 = vrot.lane.b32.xlu0 %v1070, 116
        %v1147 = vpop.permute.xlu0 %1146
        %1148 = vrot.lane.b32.xlu0 %v1071, 116
        %v1149 = vpop.permute.xlu0 %1148
        %1150 = vrot.lane.b32.xlu0 %v1072, 116
        %v1151 = vpop.permute.xlu0 %1150
        %1152 = vrot.lane.b32.xlu0 %v1073, 116
        %v1153 = vpop.permute.xlu0 %1152
        %1154 = vrot.lane.b32.xlu0 %v1074, 116
        %v1155 = vpop.permute.xlu0 %1154
        %1156 = vrot.lane.b32.xlu0 %v1075, 116
        %v1157 = vpop.permute.xlu0 %1156
        %1158 = vrot.lane.b32.xlu0 %v1076, 116
        %v1159 = vpop.permute.xlu0 %1158
        %1160 = vrot.lane.b32.xlu0 %v1077, 116
        %v1161 = vpop.permute.xlu0 %1160
        %1162 = vrot.lane.b32.xlu0 %v1078, 116
        %v1163 = vpop.permute.xlu0 %1162
        %1164 = vrot.lane.b32.xlu0 %v1079, 116
        %v1165 = vpop.permute.xlu0 %1164
        %1166 = vrot.lane.b32.xlu0 %v1080, 116
        %v1167 = vpop.permute.xlu0 %1166
        %1168 = vrot.lane.b32.xlu0 %v1081, 116
        %v1169 = vpop.permute.xlu0 %1168
        %1170 = vrot.lane.b32.xlu0 %v1082, 116
        %v1171 = vpop.permute.xlu0 %1170
        %1172 = vrot.lane.b32.xlu0 %v1083, 116
        %v1173 = vpop.permute.xlu0 %1172
        %1174 = vrot.lane.b32.xlu0 %v1084, 116
        %v1175 = vpop.permute.xlu0 %1174
        %1176 = vrot.lane.b32.xlu0 %v1085, 116
        %v1177 = vpop.permute.xlu0 %1176
        %1178 = vrot.lane.b32.xlu0 %v1086, 116
        %v1179 = vpop.permute.xlu0 %1178
        %1180 = vrot.lane.b32.xlu0 %v1087, 116
        %v1181 = vpop.permute.xlu0 %1180
        %1182 = vrot.lane.b32.xlu0 %v1088, 116
        %v1183 = vpop.permute.xlu0 %1182
        %1184 = vrot.lane.b32.xlu0 %v1089, 116
        %v1185 = vpop.permute.xlu0 %1184
        %v1218 = vsub.f32 %v930, %v1123
        %v1219 = vsub.f32 %v931, %v1125
        %v1220 = vsub.f32 %v932, %v1127
        %v1221 = vsub.f32 %v933, %v1129
        %v1222 = vsub.f32 %v934, %v1131
        %v1223 = vsub.f32 %v935, %v1133
        %v1224 = vsub.f32 %v936, %v1135
        %v1225 = vsub.f32 %v937, %v1137
        %v1226 = vsub.f32 %v938, %v1139
        %v1227 = vsub.f32 %v939, %v1141
        %v1228 = vsub.f32 %v940, %v1143
        %v1229 = vsub.f32 %v941, %v1145
        %v1230 = vsub.f32 %v942, %v1147
        %v1231 = vsub.f32 %v943, %v1149
        %v1232 = vsub.f32 %v944, %v1151
        %v1233 = vsub.f32 %v945, %v1153
        %v1234 = vsub.f32 %v946, %v1155
        %v1235 = vsub.f32 %v947, %v1157
        %v1236 = vsub.f32 %v948, %v1159
        %v1237 = vsub.f32 %v949, %v1161
        %v1238 = vsub.f32 %v950, %v1163
        %v1239 = vsub.f32 %v951, %v1165
        %v1240 = vsub.f32 %v952, %v1167
        %v1241 = vsub.f32 %v953, %v1169
        %v1242 = vsub.f32 %v954, %v1171
        %v1243 = vsub.f32 %v955, %v1173
        %v1244 = vsub.f32 %v956, %v1175
        %v1245 = vsub.f32 %v957, %v1177
        %v1246 = vsub.f32 %v958, %v1179
        %v1247 = vsub.f32 %v959, %v1181
        %v1248 = vsub.f32 %v960, %v1183
        %v1249 = vsub.f32 %v961, %v1185
        %1250 = vrot.lane.b32.xlu0 %v1058, 12
        %v1251 = vpop.permute.xlu0 %1250
        %1252 = vrot.lane.b32.xlu0 %v1059, 12
        %v1253 = vpop.permute.xlu0 %1252
        %1254 = vrot.lane.b32.xlu0 %v1060, 12
        %v1255 = vpop.permute.xlu0 %1254
        %1256 = vrot.lane.b32.xlu0 %v1061, 12
        %v1257 = vpop.permute.xlu0 %1256
        %1258 = vrot.lane.b32.xlu0 %v1062, 12
        %v1259 = vpop.permute.xlu0 %1258
        %1260 = vrot.lane.b32.xlu0 %v1063, 12
        %v1261 = vpop.permute.xlu0 %1260
        %1262 = vrot.lane.b32.xlu0 %v1064, 12
        %v1263 = vpop.permute.xlu0 %1262
        %1264 = vrot.lane.b32.xlu0 %v1065, 12
        %v1265 = vpop.permute.xlu0 %1264
        %1266 = vrot.lane.b32.xlu0 %v1066, 12
        %v1267 = vpop.permute.xlu0 %1266
        %1268 = vrot.lane.b32.xlu0 %v1067, 12
        %v1269 = vpop.permute.xlu0 %1268
        %1270 = vrot.lane.b32.xlu0 %v1068, 12
        %v1271 = vpop.permute.xlu0 %1270
        %1272 = vrot.lane.b32.xlu0 %v1069, 12
        %v1273 = vpop.permute.xlu0 %1272
        %1274 = vrot.lane.b32.xlu0 %v1070, 12
        %v1275 = vpop.permute.xlu0 %1274
        %1276 = vrot.lane.b32.xlu0 %v1071, 12
        %v1277 = vpop.permute.xlu0 %1276
        %1278 = vrot.lane.b32.xlu0 %v1072, 12
        %v1279 = vpop.permute.xlu0 %1278
        %1280 = vrot.lane.b32.xlu0 %v1073, 12
        %v1281 = vpop.permute.xlu0 %1280
        %1282 = vrot.lane.b32.xlu0 %v1074, 12
        %v1283 = vpop.permute.xlu0 %1282
        %1284 = vrot.lane.b32.xlu0 %v1075, 12
        %v1285 = vpop.permute.xlu0 %1284
        %1286 = vrot.lane.b32.xlu0 %v1076, 12
        %v1287 = vpop.permute.xlu0 %1286
        %1288 = vrot.lane.b32.xlu0 %v1077, 12
        %v1289 = vpop.permute.xlu0 %1288
        %1290 = vrot.lane.b32.xlu0 %v1078, 12
        %v1291 = vpop.permute.xlu0 %1290
        %1292 = vrot.lane.b32.xlu0 %v1079, 12
        %v1293 = vpop.permute.xlu0 %1292
        %1294 = vrot.lane.b32.xlu0 %v1080, 12
        %v1295 = vpop.permute.xlu0 %1294
        %1296 = vrot.lane.b32.xlu0 %v1081, 12
        %v1297 = vpop.permute.xlu0 %1296
        %1298 = vrot.lane.b32.xlu0 %v1082, 12
        %v1299 = vpop.permute.xlu0 %1298
        %1300 = vrot.lane.b32.xlu0 %v1083, 12
        %v1301 = vpop.permute.xlu0 %1300
        %1302 = vrot.lane.b32.xlu0 %v1084, 12
        %v1303 = vpop.permute.xlu0 %1302
        %1304 = vrot.lane.b32.xlu0 %v1085, 12
        %v1305 = vpop.permute.xlu0 %1304
        %1306 = vrot.lane.b32.xlu0 %v1086, 12
        %v1307 = vpop.permute.xlu0 %1306
        %1308 = vrot.lane.b32.xlu0 %v1087, 12
        %v1309 = vpop.permute.xlu0 %1308
        %1310 = vrot.lane.b32.xlu0 %v1088, 12
        %v1311 = vpop.permute.xlu0 %1310
        %1312 = vrot.lane.b32.xlu0 %v1089, 12
        %v1313 = vpop.permute.xlu0 %1312
        %v1346 = vadd.f32 %v930, %v1251
        %v1347 = vadd.f32 %v931, %v1253
        %v1348 = vadd.f32 %v932, %v1255
        %v1349 = vadd.f32 %v933, %v1257
        %v1350 = vadd.f32 %v934, %v1259
        %v1351 = vadd.f32 %v935, %v1261
        %v1352 = vadd.f32 %v936, %v1263
        %v1353 = vadd.f32 %v937, %v1265
        %v1354 = vadd.f32 %v938, %v1267
        %v1355 = vadd.f32 %v939, %v1269
        %v1356 = vadd.f32 %v940, %v1271
        %v1357 = vadd.f32 %v941, %v1273
        %v1358 = vadd.f32 %v942, %v1275
        %v1359 = vadd.f32 %v943, %v1277
        %v1360 = vadd.f32 %v944, %v1279
        %v1361 = vadd.f32 %v945, %v1281
        %v1362 = vadd.f32 %v946, %v1283
        %v1363 = vadd.f32 %v947, %v1285
        %v1364 = vadd.f32 %v948, %v1287
        %v1365 = vadd.f32 %v949, %v1289
        %v1366 = vadd.f32 %v950, %v1291
        %v1367 = vadd.f32 %v951, %v1293
        %v1368 = vadd.f32 %v952, %v1295
        %v1369 = vadd.f32 %v953, %v1297
        %v1370 = vadd.f32 %v954, %v1299
        %v1371 = vadd.f32 %v955, %v1301
        %v1372 = vadd.f32 %v956, %v1303
        %v1373 = vadd.f32 %v957, %v1305
        %v1374 = vadd.f32 %v958, %v1307
        %v1375 = vadd.f32 %v959, %v1309
        %v1376 = vadd.f32 %v960, %v1311
        %v1377 = vadd.f32 %v961, %v1313
        %v1378 = vld [vmem:[%s2] sm:$0x1]
        %vm1379 = vcmp.gt.f32.partialorder %v1378, 0.5
        %v1380 = vsel %vm1379, 1, 0
        %v1381 = vlaneseq
        %v1382 = vshrl.u32 %v1381, 7
        %v1383 = vsub.s32 0, %v1382
        %v1384 = vrot.slane %v1380, %v1383
        %vm1385 = vcmp.eq.s32.totalorder %v1384, 1
        %1418 = vrot.lane.b32.xlu0 %v1346, 116
        %v1419 = vpop.permute.xlu0 %1418
        %1420 = vrot.lane.b32.xlu0 %v1347, 116
        %v1421 = vpop.permute.xlu0 %1420
        %1422 = vrot.lane.b32.xlu0 %v1348, 116
        %v1423 = vpop.permute.xlu0 %1422
        %1424 = vrot.lane.b32.xlu0 %v1349, 116
        %v1425 = vpop.permute.xlu0 %1424
        %1426 = vrot.lane.b32.xlu0 %v1350, 116
        %v1427 = vpop.permute.xlu0 %1426
        %1428 = vrot.lane.b32.xlu0 %v1351, 116
        %v1429 = vpop.permute.xlu0 %1428
        %1430 = vrot.lane.b32.xlu0 %v1352, 116
        %v1431 = vpop.permute.xlu0 %1430
        %1432 = vrot.lane.b32.xlu0 %v1353, 116
        %v1433 = vpop.permute.xlu0 %1432
        %1434 = vrot.lane.b32.xlu0 %v1354, 116
        %v1435 = vpop.permute.xlu0 %1434
        %1436 = vrot.lane.b32.xlu0 %v1355, 116
        %v1437 = vpop.permute.xlu0 %1436
        %1438 = vrot.lane.b32.xlu0 %v1356, 116
        %v1439 = vpop.permute.xlu0 %1438
        %1440 = vrot.lane.b32.xlu0 %v1357, 116
        %v1441 = vpop.permute.xlu0 %1440
        %1442 = vrot.lane.b32.xlu0 %v1358, 116
        %v1443 = vpop.permute.xlu0 %1442
        %1444 = vrot.lane.b32.xlu0 %v1359, 116
        %v1445 = vpop.permute.xlu0 %1444
        %1446 = vrot.lane.b32.xlu0 %v1360, 116
        %v1447 = vpop.permute.xlu0 %1446
        %1448 = vrot.lane.b32.xlu0 %v1361, 116
        %v1449 = vpop.permute.xlu0 %1448
        %1450 = vrot.lane.b32.xlu0 %v1362, 116
        %v1451 = vpop.permute.xlu0 %1450
        %1452 = vrot.lane.b32.xlu0 %v1363, 116
        %v1453 = vpop.permute.xlu0 %1452
        %1454 = vrot.lane.b32.xlu0 %v1364, 116
        %v1455 = vpop.permute.xlu0 %1454
        %1456 = vrot.lane.b32.xlu0 %v1365, 116
        %v1457 = vpop.permute.xlu0 %1456
        %1458 = vrot.lane.b32.xlu0 %v1366, 116
        %v1459 = vpop.permute.xlu0 %1458
        %1460 = vrot.lane.b32.xlu0 %v1367, 116
        %v1461 = vpop.permute.xlu0 %1460
        %1462 = vrot.lane.b32.xlu0 %v1368, 116
        %v1463 = vpop.permute.xlu0 %1462
        %1464 = vrot.lane.b32.xlu0 %v1369, 116
        %v1465 = vpop.permute.xlu0 %1464
        %1466 = vrot.lane.b32.xlu0 %v1370, 116
        %v1467 = vpop.permute.xlu0 %1466
        %1468 = vrot.lane.b32.xlu0 %v1371, 116
        %v1469 = vpop.permute.xlu0 %1468
        %1470 = vrot.lane.b32.xlu0 %v1372, 116
        %v1471 = vpop.permute.xlu0 %1470
        %1472 = vrot.lane.b32.xlu0 %v1373, 116
        %v1473 = vpop.permute.xlu0 %1472
        %1474 = vrot.lane.b32.xlu0 %v1374, 116
        %v1475 = vpop.permute.xlu0 %1474
        %1476 = vrot.lane.b32.xlu0 %v1375, 116
        %v1477 = vpop.permute.xlu0 %1476
        %1478 = vrot.lane.b32.xlu0 %v1376, 116
        %v1479 = vpop.permute.xlu0 %1478
        %1480 = vrot.lane.b32.xlu0 %v1377, 116
        %v1481 = vpop.permute.xlu0 %1480
        %v1514 = vsel %vm1385, %v1218, %v1419
        %v1515 = vsel %vm1385, %v1219, %v1421
        %v1516 = vsel %vm1385, %v1220, %v1423
        %v1517 = vsel %vm1385, %v1221, %v1425
        %v1518 = vsel %vm1385, %v1222, %v1427
        %v1519 = vsel %vm1385, %v1223, %v1429
        %v1520 = vsel %vm1385, %v1224, %v1431
        %v1521 = vsel %vm1385, %v1225, %v1433
        %v1522 = vsel %vm1385, %v1226, %v1435
        %v1523 = vsel %vm1385, %v1227, %v1437
        %v1524 = vsel %vm1385, %v1228, %v1439
        %v1525 = vsel %vm1385, %v1229, %v1441
        %v1526 = vsel %vm1385, %v1230, %v1443
        %v1527 = vsel %vm1385, %v1231, %v1445
        %v1528 = vsel %vm1385, %v1232, %v1447
        %v1529 = vsel %vm1385, %v1233, %v1449
        %v1530 = vsel %vm1385, %v1234, %v1451
        %v1531 = vsel %vm1385, %v1235, %v1453
        %v1532 = vsel %vm1385, %v1236, %v1455
        %v1533 = vsel %vm1385, %v1237, %v1457
        %v1534 = vsel %vm1385, %v1238, %v1459
        %v1535 = vsel %vm1385, %v1239, %v1461
        %v1536 = vsel %vm1385, %v1240, %v1463
        %v1537 = vsel %vm1385, %v1241, %v1465
        %v1538 = vsel %vm1385, %v1242, %v1467
        %v1539 = vsel %vm1385, %v1243, %v1469
        %v1540 = vsel %vm1385, %v1244, %v1471
        %v1541 = vsel %vm1385, %v1245, %v1473
        %v1542 = vsel %vm1385, %v1246, %v1475
        %v1543 = vsel %vm1385, %v1247, %v1477
        %v1544 = vsel %vm1385, %v1248, %v1479
        %v1545 = vsel %vm1385, %v1249, %v1481
        %1578 = vrot.lane.b32.xlu0 %v1514, 12
        %v1579 = vpop.permute.xlu0 %1578
        %1580 = vrot.lane.b32.xlu0 %v1515, 12
        %v1581 = vpop.permute.xlu0 %1580
        %1582 = vrot.lane.b32.xlu0 %v1516, 12
        %v1583 = vpop.permute.xlu0 %1582
        %1584 = vrot.lane.b32.xlu0 %v1517, 12
        %v1585 = vpop.permute.xlu0 %1584
        %1586 = vrot.lane.b32.xlu0 %v1518, 12
        %v1587 = vpop.permute.xlu0 %1586
        %1588 = vrot.lane.b32.xlu0 %v1519, 12
        %v1589 = vpop.permute.xlu0 %1588
        %1590 = vrot.lane.b32.xlu0 %v1520, 12
        %v1591 = vpop.permute.xlu0 %1590
        %1592 = vrot.lane.b32.xlu0 %v1521, 12
        %v1593 = vpop.permute.xlu0 %1592
        %1594 = vrot.lane.b32.xlu0 %v1522, 12
        %v1595 = vpop.permute.xlu0 %1594
        %1596 = vrot.lane.b32.xlu0 %v1523, 12
        %v1597 = vpop.permute.xlu0 %1596
        %1598 = vrot.lane.b32.xlu0 %v1524, 12
        %v1599 = vpop.permute.xlu0 %1598
        %1600 = vrot.lane.b32.xlu0 %v1525, 12
        %v1601 = vpop.permute.xlu0 %1600
        %1602 = vrot.lane.b32.xlu0 %v1526, 12
        %v1603 = vpop.permute.xlu0 %1602
        %1604 = vrot.lane.b32.xlu0 %v1527, 12
        %v1605 = vpop.permute.xlu0 %1604
        %1606 = vrot.lane.b32.xlu0 %v1528, 12
        %v1607 = vpop.permute.xlu0 %1606
        %1608 = vrot.lane.b32.xlu0 %v1529, 12
        %v1609 = vpop.permute.xlu0 %1608
        %1610 = vrot.lane.b32.xlu0 %v1530, 12
        %v1611 = vpop.permute.xlu0 %1610
        %1612 = vrot.lane.b32.xlu0 %v1531, 12
        %v1613 = vpop.permute.xlu0 %1612
        %1614 = vrot.lane.b32.xlu0 %v1532, 12
        %v1615 = vpop.permute.xlu0 %1614
        %1616 = vrot.lane.b32.xlu0 %v1533, 12
        %v1617 = vpop.permute.xlu0 %1616
        %1618 = vrot.lane.b32.xlu0 %v1534, 12
        %v1619 = vpop.permute.xlu0 %1618
        %1620 = vrot.lane.b32.xlu0 %v1535, 12
        %v1621 = vpop.permute.xlu0 %1620
        %1622 = vrot.lane.b32.xlu0 %v1536, 12
        %v1623 = vpop.permute.xlu0 %1622
        %1624 = vrot.lane.b32.xlu0 %v1537, 12
        %v1625 = vpop.permute.xlu0 %1624
        %1626 = vrot.lane.b32.xlu0 %v1538, 12
        %v1627 = vpop.permute.xlu0 %1626
        %1628 = vrot.lane.b32.xlu0 %v1539, 12
        %v1629 = vpop.permute.xlu0 %1628
        %1630 = vrot.lane.b32.xlu0 %v1540, 12
        %v1631 = vpop.permute.xlu0 %1630
        %1632 = vrot.lane.b32.xlu0 %v1541, 12
        %v1633 = vpop.permute.xlu0 %1632
        %1634 = vrot.lane.b32.xlu0 %v1542, 12
        %v1635 = vpop.permute.xlu0 %1634
        %1636 = vrot.lane.b32.xlu0 %v1543, 12
        %v1637 = vpop.permute.xlu0 %1636
        %1638 = vrot.lane.b32.xlu0 %v1544, 12
        %v1639 = vpop.permute.xlu0 %1638
        %1640 = vrot.lane.b32.xlu0 %v1545, 12
        %v1641 = vpop.permute.xlu0 %1640
        %vm1674 = vcmask 97280
        %v1675 = vsel %vm1674, %v484, %v1579
        %v1676 = vsel %vm1674, %v487, %v1581
        %v1677 = vsel %vm1674, %v492, %v1583
        %v1678 = vsel %vm1674, %v495, %v1585
        %v1679 = vsel %vm1674, %v500, %v1587
        %v1680 = vsel %vm1674, %v503, %v1589
        %v1681 = vsel %vm1674, %v508, %v1591
        %v1682 = vsel %vm1674, %v511, %v1593
        %v1683 = vsel %vm1674, %v516, %v1595
        %v1684 = vsel %vm1674, %v519, %v1597
        %v1685 = vsel %vm1674, %v524, %v1599
        %v1686 = vsel %vm1674, %v527, %v1601
        %v1687 = vsel %vm1674, %v532, %v1603
        %v1688 = vsel %vm1674, %v535, %v1605
        %v1689 = vsel %vm1674, %v540, %v1607
        %v1690 = vsel %vm1674, %v543, %v1609
        %v1691 = vsel %vm1674, %v548, %v1611
        %v1692 = vsel %vm1674, %v551, %v1613
        %v1693 = vsel %vm1674, %v556, %v1615
        %v1694 = vsel %vm1674, %v559, %v1617
        %v1695 = vsel %vm1674, %v564, %v1619
        %v1696 = vsel %vm1674, %v567, %v1621
        %v1697 = vsel %vm1674, %v572, %v1623
        %v1698 = vsel %vm1674, %v575, %v1625
        %v1699 = vsel %vm1674, %v580, %v1627
        %v1700 = vsel %vm1674, %v583, %v1629
        %v1701 = vsel %vm1674, %v588, %v1631
        %v1702 = vsel %vm1674, %v591, %v1633
        %v1703 = vsel %vm1674, %v596, %v1635
        %v1704 = vsel %vm1674, %v599, %v1637
        %v1705 = vsel %vm1674, %v604, %v1639
        %v1706 = vsel %vm1674, %v607, %v1641
        %vm1707 = vcmask 195584
        %v1708 = vsel %vm1707, %v1675, %v484
        %v1709 = vsel %vm1707, %v1676, %v487
        %v1710 = vsel %vm1707, %v1677, %v492
        %v1711 = vsel %vm1707, %v1678, %v495
        %v1712 = vsel %vm1707, %v1679, %v500
        %v1713 = vsel %vm1707, %v1680, %v503
        %v1714 = vsel %vm1707, %v1681, %v508
        %v1715 = vsel %vm1707, %v1682, %v511
        %v1716 = vsel %vm1707, %v1683, %v516
        %v1717 = vsel %vm1707, %v1684, %v519
        %v1718 = vsel %vm1707, %v1685, %v524
        %v1719 = vsel %vm1707, %v1686, %v527
        %v1720 = vsel %vm1707, %v1687, %v532
        %v1721 = vsel %vm1707, %v1688, %v535
        %v1722 = vsel %vm1707, %v1689, %v540
        %v1723 = vsel %vm1707, %v1690, %v543
        %v1724 = vsel %vm1707, %v1691, %v548
        %v1725 = vsel %vm1707, %v1692, %v551
        %v1726 = vsel %vm1707, %v1693, %v556
        %v1727 = vsel %vm1707, %v1694, %v559
        %v1728 = vsel %vm1707, %v1695, %v564
        %v1729 = vsel %vm1707, %v1696, %v567
        %v1730 = vsel %vm1707, %v1697, %v572
        %v1731 = vsel %vm1707, %v1698, %v575
        %v1732 = vsel %vm1707, %v1699, %v580
        %v1733 = vsel %vm1707, %v1700, %v583
        %v1734 = vsel %vm1707, %v1701, %v588
        %v1735 = vsel %vm1707, %v1702, %v591
        %v1736 = vsel %vm1707, %v1703, %v596
        %v1737 = vsel %vm1707, %v1704, %v599
        %v1738 = vsel %vm1707, %v1705, %v604
        %v1739 = vsel %vm1707, %v1706, %v607
        %1740 = vst [vmem:[%s234] sm:$0xff] %v1708
        %1741 = vst [vmem:[%s234 + $0x8] sm:$0xff] %v1709
        %1742 = vst [vmem:[%s234 + $0x10] sm:$0xff] %v1710
        %1743 = vst [vmem:[%s234 + $0x18] sm:$0xff] %v1711
        %1744 = vst [vmem:[%s234 + $0x20] sm:$0xff] %v1712
        %1745 = vst [vmem:[%s234 + $0x28] sm:$0xff] %v1713
        %1746 = vst [vmem:[%s234 + $0x30] sm:$0xff] %v1714
        %1747 = vst [vmem:[%s234 + $0x38] sm:$0xff] %v1715
        %1748 = vst [vmem:[%s234 + $0x40] sm:$0xff] %v1716
        %1749 = vst [vmem:[%s234 + $0x48] sm:$0xff] %v1717
        %1750 = vst [vmem:[%s234 + $0x50] sm:$0xff] %v1718
        %1751 = vst [vmem:[%s234 + $0x58] sm:$0xff] %v1719
        %1752 = vst [vmem:[%s234 + $0x60] sm:$0xff] %v1720
        %1753 = vst [vmem:[%s234 + $0x68] sm:$0xff] %v1721
        %1754 = vst [vmem:[%s234 + $0x70] sm:$0xff] %v1722
        %1755 = vst [vmem:[%s234 + $0x78] sm:$0xff] %v1723
        %1756 = vst [vmem:[%s234 + $0x80] sm:$0xff] %v1724
        %1757 = vst [vmem:[%s234 + $0x88] sm:$0xff] %v1725
        %1758 = vst [vmem:[%s234 + $0x90] sm:$0xff] %v1726
        %1759 = vst [vmem:[%s234 + $0x98] sm:$0xff] %v1727
        %1760 = vst [vmem:[%s234 + $0xa0] sm:$0xff] %v1728
        %1761 = vst [vmem:[%s234 + $0xa8] sm:$0xff] %v1729
        %1762 = vst [vmem:[%s234 + $0xb0] sm:$0xff] %v1730
        %1763 = vst [vmem:[%s234 + $0xb8] sm:$0xff] %v1731
        %1764 = vst [vmem:[%s234 + $0xc0] sm:$0xff] %v1732
        %1765 = vst [vmem:[%s234 + $0xc8] sm:$0xff] %v1733
        %1766 = vst [vmem:[%s234 + $0xd0] sm:$0xff] %v1734
        %1767 = vst [vmem:[%s234 + $0xd8] sm:$0xff] %v1735
        %1768 = vst [vmem:[%s234 + $0xe0] sm:$0xff] %v1736
        %1769 = vst [vmem:[%s234 + $0xe8] sm:$0xff] %v1737
        %1770 = vst [vmem:[%s234 + $0xf0] sm:$0xff] %v1738
        %1771 = vst [vmem:[%s234 + $0xf8] sm:$0xff] %v1739
        %s1772 = sand.u32 %s142, 1
        %s1773 = scalar_lea.sflag [#allocation3], %s1772
        %s1774 = sand.u32 %s142, 1
        %s1775 = smul.addr %s1774, 256
        %s1776 = scalar_lea.vmem [#allocation2], %s1775
        // Predicated region
        $region41: #{tpu_custom_call.1} parent=39 // pred_check
          %p1777 = pneg %p152
        $region42: #{tpu_custom_call.1} parent=39 // pred_check_branch
          %1779 = sbr.rel (%p1777) target = $region44
        $region43: #{tpu_custom_call.1} parent=39 // pred_region
          %s1780 = smul.u32 32, %s19
          %s1782 = ssub.s32 4096, 4096
          %1783 = vsyncadd %s1773, %s1782
          %s1784 = smul.addr %s1780, 128
          %s1785 = scalar_lea.hbm %s5, %s1784
          %s1786 = sshll.u32 %s1776, 4
          %s1787 = int_to_ptr.vmem [resolvable:$true] %s1786
          %1792 = dma.vmem_to_hbm [thread:$0]  %s1787, 4096, %s1785, %s1773, 128, 128, 8
        $region44: #{tpu_custom_call.1} parent=39 // pred_fallthru
          _
      $region40: #{tpu_custom_call.1} parent=5 // pred_fallthru
        _
      %p1793 = scmp.le.s32.totalorder 2, %s14
      // Predicated region
      $region45: #{tpu_custom_call.1} parent=5 // pred_check
        %p1794 = pneg %p1793
      $region46: #{tpu_custom_call.1} parent=5 // pred_check_branch
        %1796 = sbr.rel (%p1794) target = $region48
      $region47: #{tpu_custom_call.1} parent=5 // pred_region
        %s1797 = ssub.s32 %s14, 2
        // Predicated region
        $region49: #{tpu_custom_call.1} parent=47 // pred_check
          %p1798 = pneg %p158
        $region50: #{tpu_custom_call.1} parent=47 // pred_check_branch
          %1800 = sbr.rel (%p1798) target = $region52
        $region51: #{tpu_custom_call.1} parent=47 // pred_region
          %s1801 = sand.u32 %s143, 1
          %s1802 = scalar_lea.sflag [#allocation3], %s1801
          %s1803 = sand.u32 %s143, 1
          %s1804 = smul.addr %s1803, 256
          %s1805 = scalar_lea.vmem [#allocation2], %s1804
          %1806 = dma.done %s1802, 4096
        $region52: #{tpu_custom_call.1} parent=47 // pred_fallthru
          _
      $region48: #{tpu_custom_call.1} parent=5 // pred_fallthru
        _
    $region6: #{tpu_custom_call.1} parent=1 // loop_footer
      %s18 = sadd.s32 1, %s14
    $region7: #{tpu_custom_call.1} parent=1 // loop_footer_branch
      %13 = sbr.rel target = $region3
    $region8: #{tpu_custom_call.1} parent=1 // loop_exit
      _
    %1807 = vsyncpa [#allocation3], 1
    %s1808 = scalar_lea.sflag [#allocation3], 1
    %1809 = vsyncpa %s1808, 1

</llo_original>
